<compile_context>
chip_gen: v7x
topology: tpu7x:2x2x1
jax: 0.10.0
libtpu: 0.0.40
codegen_flags: <defaults>
</compile_context>

<pallas_src>
import functools

import jax
import jax.numpy as jnp
from jax.experimental import pallas as pl
from jax.experimental.pallas import tpu as pltpu


# ----------------------------- Pallas kernel -------------------------------

def _conv_in_relu_kernel(x_ref, w_ref, g_ref, b_ref, o_ref, *,
                         K, stride, OH, OW, eps):
    """Fused Conv2d (bias-free) + InstanceNorm(affine) + ReLU for one image.

    x_ref: (1, Hp, Wp, Cin)   zero-padded NHWC image (DMA'd once)
    w_ref: (K*K, Cout, Cin)   conv weight, (di, dj)-major
    g_ref: (Cout, 1)          InstanceNorm gamma
    b_ref: (Cout, 1)          InstanceNorm beta
    o_ref: (1, Cout, OH*OW)   output, lane-dense over flattened spatial dim
    """
    Cout, HW = o_ref.shape[1], o_ref.shape[2]

    # Conv as a K*K-step accumulation of shifted-slice matmuls.
    # acc is (Cout, HW): 8 sublanes x (HW) lanes -> fully dense vregs.
    acc = jnp.zeros((Cout, HW), jnp.float32)
    for di in range(K):
        for dj in range(K):
            if stride == 1:
                xs = x_ref[0, di:di + OH, dj:dj + OW, :]            # (OH, OW, Cin)
            else:
                # TODO(synk): strided slice path (stride > 1) is not exercised
                # by the test configuration; kept as best-effort.
                xs = x_ref[0,
                           di:di + (OH - 1) * stride + 1,
                           dj:dj + (OW - 1) * stride + 1, :][::stride, ::stride, :]
            # Layout-preserving fold (requires OW % 8 == 0): (OH,OW,Cin)->(OH*OW,Cin)
            xs = xs.reshape(HW, xs.shape[-1])
            # (Cout, Cin) x (HW, Cin)^T -> (Cout, HW), f32 accumulation.
            acc = acc + jax.lax.dot_general(
                w_ref[di * K + dj], xs,
                dimension_numbers=(((1,), (1,)), ((), ())),
                preferred_element_type=jnp.float32)

    # Instance norm over the spatial (lane) axis; biased variance matches
    # PyTorch InstanceNorm.  acc lives in registers, so the two-pass mean/var
    # costs no extra VMEM reads.  Note: the conv bias was dropped upstream --
    # it is removed exactly by this mean subtraction.
    mean = jnp.mean(acc, axis=1, keepdims=True)                     # (Cout, 1)
    xc = acc - mean
    var = jnp.mean(xc * xc, axis=1, keepdims=True)                  # (Cout, 1)
    y = xc * (jax.lax.rsqrt(var + eps) * g_ref[...]) + b_ref[...]
    o_ref[0] = jnp.maximum(y, 0.0).astype(o_ref.dtype)              # lane-dense store


# ------------------------------ wrapper glue --------------------------------

def conv_block_forward(x_nchw, params, *, kernel_size, stride, upsample,
                       eps=1e-5, compute_dtype=jnp.float32):
    """Forward pass of ConvBlock. x_nchw: (N, Cin, H, W) float32, returns NCHW."""
    w = params["conv_w"]        # (K, K, Cin, Cout)
    gamma = params["in_gamma"]  # (Cout,)
    beta = params["in_beta"]    # (Cout,)
    # params["conv_b"] is intentionally NOT used: a per-channel constant added
    # before InstanceNorm is mathematically a no-op (mean subtraction removes it).
    K = kernel_size
    Cout = w.shape[-1]

    x = jnp.transpose(x_nchw, (0, 2, 3, 1)).astype(jnp.float32)     # NHWC
    if upsample:
        # nearest-neighbor x2 (pure index replication -> plain JAX glue)
        x = jnp.repeat(jnp.repeat(x, 2, axis=1), 2, axis=2)

    N, H, W, Cin = x.shape
    pad = K // 2
    OH = (H + 2 * pad - K) // stride + 1
    OW = (W + 2 * pad - K) // stride + 1
    HW = OH * OW
    # The in-kernel fold (OH, OW, Cin) -> (OH*OW, Cin) is a pure vreg relabel
    # only when OW is a multiple of the 8-row sublane tile.
    assert OW % 8 == 0, "ConvBlock Pallas kernel expects output width % 8 == 0"
    # TODO(synk): support ragged OW (and very large HW on v5e/v7x VMEM budgets)
    # via a masked, HW-tiled two-pass reduction.

    x_pad = jnp.pad(x, ((0, 0), (pad, pad), (pad, pad), (0, 0))).astype(compute_dtype)
    Hp, Wp = H + 2 * pad, W + 2 * pad

    # (K, K, Cin, Cout) -> (K*K, Cout, Cin), (di, dj)-major.
    w_k = jnp.transpose(w, (0, 1, 3, 2)).reshape(K * K, Cout, Cin).astype(compute_dtype)
    g2 = gamma.reshape(Cout, 1).astype(jnp.float32)
    b2 = beta.reshape(Cout, 1).astype(jnp.float32)

    kernel = functools.partial(_conv_in_relu_kernel, K=K, stride=stride,
                               OH=OH, OW=OW, eps=eps)

    out = pl.pallas_call(
        kernel,
        out_shape=jax.ShapeDtypeStruct((N, Cout, HW), jnp.float32),
        grid=(N,),
        in_specs=[
            pl.BlockSpec((1, Hp, Wp, Cin), lambda n: (n, 0, 0, 0)),   # one image / step
            pl.BlockSpec((K * K, Cout, Cin), lambda n: (0, 0, 0)),    # weights (tiny)
            pl.BlockSpec((Cout, 1), lambda n: (0, 0)),                # gamma
            pl.BlockSpec((Cout, 1), lambda n: (0, 0)),                # beta
        ],
        out_specs=pl.BlockSpec((1, Cout, HW), lambda n: (n, 0, 0)),
        compiler_params=pltpu.CompilerParams(
            dimension_semantics=("parallel",)),
    )(x_pad, w_k, g2, b2)

    # (N, Cout, OH*OW) -> (N, Cout, OH, OW): free metadata reshape, already NCHW.
    return out.reshape(N, Cout, OH, OW)


# ------------------------------ reference (pure JAX) ------------------------

def _reference_forward(x_nchw, params, *, kernel_size, stride, upsample, eps=1e-5):
    w = jnp.transpose(params["conv_w"], (3, 2, 0, 1))           # (Cout, Cin, K, K)
    b = params["conv_b"]
    gamma = params["in_gamma"]
    beta = params["in_beta"]
    pad = kernel_size // 2
    x = x_nchw
    if upsample:
        x = jnp.repeat(jnp.repeat(x, 2, axis=2), 2, axis=3)
    y = jax.lax.conv_general_dilated(
        x, w, window_strides=(stride, stride),
        padding=[(pad, pad), (pad, pad)],
        dimension_numbers=("NCHW", "OIHW", "NCHW"))
    y = y + b[None, :, None, None]
    mean = jnp.mean(y, axis=(2, 3), keepdims=True)
    var = jnp.mean((y - mean) ** 2, axis=(2, 3), keepdims=True)
    y = (y - mean) * jax.lax.rsqrt(var + eps)
    y = y * gamma[None, :, None, None] + beta[None, :, None, None]
    return jnp.maximum(y, 0.0)


# ----------------------------------- main ------------------------------------

if __name__ == "__main__":
    # ConvBlock(in_channels=4, out_channels=8, kernel_size=3, stride=1, upsample=False)
    in_channels, out_channels, kernel_size, stride, upsample = 4, 8, 3, 1, False
    N, H, W = 2, 16, 16

    key = jax.random.PRNGKey(0)
    k_x, k_w, k_b, k_g, k_bt = jax.random.split(key, 5)

    x = jax.random.normal(k_x, (N, in_channels, H, W), dtype=jnp.float32)
    params = {
        # weight stored as (K, K, Cin, Cout); deterministic synthetic init
        "conv_w": 0.1 * jax.random.normal(
            k_w, (kernel_size, kernel_size, in_channels, out_channels), dtype=jnp.float32),
        "conv_b": 0.1 * jax.random.normal(k_b, (out_channels,), dtype=jnp.float32),
        "in_gamma": 1.0 + 0.1 * jax.random.normal(k_g, (out_channels,), dtype=jnp.float32),
        "in_beta": 0.1 * jax.random.normal(k_bt, (out_channels,), dtype=jnp.float32),
    }

    out = conv_block_forward(
        x, params, kernel_size=kernel_size, stride=stride, upsample=upsample)
    out = jax.block_until_ready(out)

    ref = _reference_forward(
        x, params, kernel_size=kernel_size, stride=stride, upsample=upsample)
    ref = jax.block_until_ready(ref)

    assert out.shape == ref.shape == (N, out_channels, H, W)
    assert jnp.allclose(out, ref, atol=1e-4, rtol=1e-4), "Pallas ConvBlock mismatch vs reference"

    print("KERNEL_OK")
</pallas_src>

<mosaic_0001>
module attributes {stable_mosaic.version = 11 : i64} {
  func.func @_conv_in_relu_kernel(%arg0: i32, %arg1: memref<1x18x18x4xf32, #tpu.memory_space<vmem>>, %arg2: memref<9x8x4xf32, #tpu.memory_space<vmem>>, %arg3: memref<8x1xf32, #tpu.memory_space<vmem>>, %arg4: memref<8x1xf32, #tpu.memory_space<vmem>>, %arg5: memref<1x8x256xf32, #tpu.memory_space<vmem>>) attributes {dimension_semantics = [#tpu.dimension_semantics<parallel>], iteration_bounds = array<i64: 2>, scalar_prefetch = 0 : i64, scratch_operands = 0 : i64, tpu.core_type = #tpu.core_type<tc>, window_params = [{transform_indices = @transform_0, window_bounds = array<i64: 1, 18, 18, 4>}, {pipeline_mode = #tpu.pipeline_mode<synchronous>, transform_indices = @transform_1, window_bounds = array<i64: 9, 8, 4>}, {pipeline_mode = #tpu.pipeline_mode<synchronous>, transform_indices = @transform_2, window_bounds = array<i64: 8, 1>}, {pipeline_mode = #tpu.pipeline_mode<synchronous>, transform_indices = @transform_3, window_bounds = array<i64: 8, 1>}, {transform_indices = @transform_4, window_bounds = array<i64: 1, 8, 256>}]} {
    %cst = arith.constant 0.000000e+00 : f32
    %0 = vector.broadcast %cst : f32 to vector<8x256xf32>
    %c0 = arith.constant 0 : index
    %c0_0 = arith.constant 0 : index
    %c0_1 = arith.constant 0 : index
    %c0_2 = arith.constant 0 : index
    %1 = vector.load %arg1[%c0, %c0_0, %c0_1, %c0_2] : memref<1x18x18x4xf32, #tpu.memory_space<vmem>>, vector<1x16x16x4xf32>
    %2 = vector.shape_cast %1 : vector<1x16x16x4xf32> to vector<16x16x4xf32>
    %3 = vector.shape_cast %2 : vector<16x16x4xf32> to vector<256x4xf32>
    %c0_3 = arith.constant 0 : index
    %c0_4 = arith.constant 0 : index
    %c0_5 = arith.constant 0 : index
    %4 = vector.load %arg2[%c0_3, %c0_4, %c0_5] : memref<9x8x4xf32, #tpu.memory_space<vmem>>, vector<1x8x4xf32>
    %5 = vector.shape_cast %4 : vector<1x8x4xf32> to vector<8x4xf32>
    %cst_6 = arith.constant dense<0.000000e+00> : vector<8x256xf32>
    %6 = tpu.matmul %5, %3, %cst_6 {dimension_numbers = #tpu.dot_dimension_numbers<[1], [1], [0], [0], [0, 0, 1, 0], [], []>} : vector<8x4xf32>, vector<256x4xf32>, vector<8x256xf32> -> vector<8x256xf32>
    %7 = arith.addf %0, %6 : vector<8x256xf32>
    %c0_7 = arith.constant 0 : index
    %c0_8 = arith.constant 0 : index
    %c1 = arith.constant 1 : index
    %c0_9 = arith.constant 0 : index
    %8 = vector.load %arg1[%c0_7, %c0_8, %c1, %c0_9] : memref<1x18x18x4xf32, #tpu.memory_space<vmem>>, vector<1x16x16x4xf32>
    %9 = vector.shape_cast %8 : vector<1x16x16x4xf32> to vector<16x16x4xf32>
    %10 = vector.shape_cast %9 : vector<16x16x4xf32> to vector<256x4xf32>
    %c1_10 = arith.constant 1 : index
    %c0_11 = arith.constant 0 : index
    %c0_12 = arith.constant 0 : index
    %11 = vector.load %arg2[%c1_10, %c0_11, %c0_12] : memref<9x8x4xf32, #tpu.memory_space<vmem>>, vector<1x8x4xf32>
    %12 = vector.shape_cast %11 : vector<1x8x4xf32> to vector<8x4xf32>
    %cst_13 = arith.constant dense<0.000000e+00> : vector<8x256xf32>
    %13 = tpu.matmul %12, %10, %cst_13 {dimension_numbers = #tpu.dot_dimension_numbers<[1], [1], [0], [0], [0, 0, 1, 0], [], []>} : vector<8x4xf32>, vector<256x4xf32>, vector<8x256xf32> -> vector<8x256xf32>
    %14 = arith.addf %7, %13 : vector<8x256xf32>
    %c0_14 = arith.constant 0 : index
    %c0_15 = arith.constant 0 : index
    %c2 = arith.constant 2 : index
    %c0_16 = arith.constant 0 : index
    %15 = vector.load %arg1[%c0_14, %c0_15, %c2, %c0_16] : memref<1x18x18x4xf32, #tpu.memory_space<vmem>>, vector<1x16x16x4xf32>
    %16 = vector.shape_cast %15 : vector<1x16x16x4xf32> to vector<16x16x4xf32>
    %17 = vector.shape_cast %16 : vector<16x16x4xf32> to vector<256x4xf32>
    %c2_17 = arith.constant 2 : index
    %c0_18 = arith.constant 0 : index
    %c0_19 = arith.constant 0 : index
    %18 = vector.load %arg2[%c2_17, %c0_18, %c0_19] : memref<9x8x4xf32, #tpu.memory_space<vmem>>, vector<1x8x4xf32>
    %19 = vector.shape_cast %18 : vector<1x8x4xf32> to vector<8x4xf32>
    %cst_20 = arith.constant dense<0.000000e+00> : vector<8x256xf32>
    %20 = tpu.matmul %19, %17, %cst_20 {dimension_numbers = #tpu.dot_dimension_numbers<[1], [1], [0], [0], [0, 0, 1, 0], [], []>} : vector<8x4xf32>, vector<256x4xf32>, vector<8x256xf32> -> vector<8x256xf32>
    %21 = arith.addf %14, %20 : vector<8x256xf32>
    %c0_21 = arith.constant 0 : index
    %c1_22 = arith.constant 1 : index
    %c0_23 = arith.constant 0 : index
    %c0_24 = arith.constant 0 : index
    %22 = vector.load %arg1[%c0_21, %c1_22, %c0_23, %c0_24] : memref<1x18x18x4xf32, #tpu.memory_space<vmem>>, vector<1x16x16x4xf32>
    %23 = vector.shape_cast %22 : vector<1x16x16x4xf32> to vector<16x16x4xf32>
    %24 = vector.shape_cast %23 : vector<16x16x4xf32> to vector<256x4xf32>
    %c3 = arith.constant 3 : index
    %c0_25 = arith.constant 0 : index
    %c0_26 = arith.constant 0 : index
    %25 = vector.load %arg2[%c3, %c0_25, %c0_26] : memref<9x8x4xf32, #tpu.memory_space<vmem>>, vector<1x8x4xf32>
    %26 = vector.shape_cast %25 : vector<1x8x4xf32> to vector<8x4xf32>
    %cst_27 = arith.constant dense<0.000000e+00> : vector<8x256xf32>
    %27 = tpu.matmul %26, %24, %cst_27 {dimension_numbers = #tpu.dot_dimension_numbers<[1], [1], [0], [0], [0, 0, 1, 0], [], []>} : vector<8x4xf32>, vector<256x4xf32>, vector<8x256xf32> -> vector<8x256xf32>
    %28 = arith.addf %21, %27 : vector<8x256xf32>
    %c0_28 = arith.constant 0 : index
    %c1_29 = arith.constant 1 : index
    %c1_30 = arith.constant 1 : index
    %c0_31 = arith.constant 0 : index
    %29 = vector.load %arg1[%c0_28, %c1_29, %c1_30, %c0_31] : memref<1x18x18x4xf32, #tpu.memory_space<vmem>>, vector<1x16x16x4xf32>
    %30 = vector.shape_cast %29 : vector<1x16x16x4xf32> to vector<16x16x4xf32>
    %31 = vector.shape_cast %30 : vector<16x16x4xf32> to vector<256x4xf32>
    %c4 = arith.constant 4 : index
    %c0_32 = arith.constant 0 : index
    %c0_33 = arith.constant 0 : index
    %32 = vector.load %arg2[%c4, %c0_32, %c0_33] : memref<9x8x4xf32, #tpu.memory_space<vmem>>, vector<1x8x4xf32>
    %33 = vector.shape_cast %32 : vector<1x8x4xf32> to vector<8x4xf32>
    %cst_34 = arith.constant dense<0.000000e+00> : vector<8x256xf32>
    %34 = tpu.matmul %33, %31, %cst_34 {dimension_numbers = #tpu.dot_dimension_numbers<[1], [1], [0], [0], [0, 0, 1, 0], [], []>} : vector<8x4xf32>, vector<256x4xf32>, vector<8x256xf32> -> vector<8x256xf32>
    %35 = arith.addf %28, %34 : vector<8x256xf32>
    %c0_35 = arith.constant 0 : index
    %c1_36 = arith.constant 1 : index
    %c2_37 = arith.constant 2 : index
    %c0_38 = arith.constant 0 : index
    %36 = vector.load %arg1[%c0_35, %c1_36, %c2_37, %c0_38] : memref<1x18x18x4xf32, #tpu.memory_space<vmem>>, vector<1x16x16x4xf32>
    %37 = vector.shape_cast %36 : vector<1x16x16x4xf32> to vector<16x16x4xf32>
    %38 = vector.shape_cast %37 : vector<16x16x4xf32> to vector<256x4xf32>
    %c5 = arith.constant 5 : index
    %c0_39 = arith.constant 0 : index
    %c0_40 = arith.constant 0 : index
    %39 = vector.load %arg2[%c5, %c0_39, %c0_40] : memref<9x8x4xf32, #tpu.memory_space<vmem>>, vector<1x8x4xf32>
    %40 = vector.shape_cast %39 : vector<1x8x4xf32> to vector<8x4xf32>
    %cst_41 = arith.constant dense<0.000000e+00> : vector<8x256xf32>
    %41 = tpu.matmul %40, %38, %cst_41 {dimension_numbers = #tpu.dot_dimension_numbers<[1], [1], [0], [0], [0, 0, 1, 0], [], []>} : vector<8x4xf32>, vector<256x4xf32>, vector<8x256xf32> -> vector<8x256xf32>
    %42 = arith.addf %35, %41 : vector<8x256xf32>
    %c0_42 = arith.constant 0 : index
    %c2_43 = arith.constant 2 : index
    %c0_44 = arith.constant 0 : index
    %c0_45 = arith.constant 0 : index
    %43 = vector.load %arg1[%c0_42, %c2_43, %c0_44, %c0_45] : memref<1x18x18x4xf32, #tpu.memory_space<vmem>>, vector<1x16x16x4xf32>
    %44 = vector.shape_cast %43 : vector<1x16x16x4xf32> to vector<16x16x4xf32>
    %45 = vector.shape_cast %44 : vector<16x16x4xf32> to vector<256x4xf32>
    %c6 = arith.constant 6 : index
    %c0_46 = arith.constant 0 : index
    %c0_47 = arith.constant 0 : index
    %46 = vector.load %arg2[%c6, %c0_46, %c0_47] : memref<9x8x4xf32, #tpu.memory_space<vmem>>, vector<1x8x4xf32>
    %47 = vector.shape_cast %46 : vector<1x8x4xf32> to vector<8x4xf32>
    %cst_48 = arith.constant dense<0.000000e+00> : vector<8x256xf32>
    %48 = tpu.matmul %47, %45, %cst_48 {dimension_numbers = #tpu.dot_dimension_numbers<[1], [1], [0], [0], [0, 0, 1, 0], [], []>} : vector<8x4xf32>, vector<256x4xf32>, vector<8x256xf32> -> vector<8x256xf32>
    %49 = arith.addf %42, %48 : vector<8x256xf32>
    %c0_49 = arith.constant 0 : index
    %c2_50 = arith.constant 2 : index
    %c1_51 = arith.constant 1 : index
    %c0_52 = arith.constant 0 : index
    %50 = vector.load %arg1[%c0_49, %c2_50, %c1_51, %c0_52] : memref<1x18x18x4xf32, #tpu.memory_space<vmem>>, vector<1x16x16x4xf32>
    %51 = vector.shape_cast %50 : vector<1x16x16x4xf32> to vector<16x16x4xf32>
    %52 = vector.shape_cast %51 : vector<16x16x4xf32> to vector<256x4xf32>
    %c7 = arith.constant 7 : index
    %c0_53 = arith.constant 0 : index
    %c0_54 = arith.constant 0 : index
    %53 = vector.load %arg2[%c7, %c0_53, %c0_54] : memref<9x8x4xf32, #tpu.memory_space<vmem>>, vector<1x8x4xf32>
    %54 = vector.shape_cast %53 : vector<1x8x4xf32> to vector<8x4xf32>
    %cst_55 = arith.constant dense<0.000000e+00> : vector<8x256xf32>
    %55 = tpu.matmul %54, %52, %cst_55 {dimension_numbers = #tpu.dot_dimension_numbers<[1], [1], [0], [0], [0, 0, 1, 0], [], []>} : vector<8x4xf32>, vector<256x4xf32>, vector<8x256xf32> -> vector<8x256xf32>
    %56 = arith.addf %49, %55 : vector<8x256xf32>
    %c0_56 = arith.constant 0 : index
    %c2_57 = arith.constant 2 : index
    %c2_58 = arith.constant 2 : index
    %c0_59 = arith.constant 0 : index
    %57 = vector.load %arg1[%c0_56, %c2_57, %c2_58, %c0_59] : memref<1x18x18x4xf32, #tpu.memory_space<vmem>>, vector<1x16x16x4xf32>
    %58 = vector.shape_cast %57 : vector<1x16x16x4xf32> to vector<16x16x4xf32>
    %59 = vector.shape_cast %58 : vector<16x16x4xf32> to vector<256x4xf32>
    %c8 = arith.constant 8 : index
    %c0_60 = arith.constant 0 : index
    %c0_61 = arith.constant 0 : index
    %60 = vector.load %arg2[%c8, %c0_60, %c0_61] : memref<9x8x4xf32, #tpu.memory_space<vmem>>, vector<1x8x4xf32>
    %61 = vector.shape_cast %60 : vector<1x8x4xf32> to vector<8x4xf32>
    %cst_62 = arith.constant dense<0.000000e+00> : vector<8x256xf32>
    %62 = tpu.matmul %61, %59, %cst_62 {dimension_numbers = #tpu.dot_dimension_numbers<[1], [1], [0], [0], [0, 0, 1, 0], [], []>} : vector<8x4xf32>, vector<256x4xf32>, vector<8x256xf32> -> vector<8x256xf32>
    %63 = arith.addf %56, %62 : vector<8x256xf32>
    %cst_63 = arith.constant dense<0.000000e+00> : vector<8xf32>
    %64 = vector.multi_reduction <add>, %63, %cst_63 [1] : vector<8x256xf32> to vector<8xf32>
    %65 = vector.shape_cast %64 : vector<8xf32> to vector<8x1xf32>
    %cst_64 = arith.constant 2.560000e+02 : f32
    %66 = vector.broadcast %cst_64 : f32 to vector<8x1xf32>
    %67 = arith.divf %65, %66 : vector<8x1xf32>
    %68 = vector.broadcast %67 : vector<8x1xf32> to vector<8x256xf32>
    %69 = arith.subf %63, %68 : vector<8x256xf32>
    %70 = arith.mulf %69, %69 : vector<8x256xf32>
    %cst_65 = arith.constant dense<0.000000e+00> : vector<8xf32>
    %71 = vector.multi_reduction <add>, %70, %cst_65 [1] : vector<8x256xf32> to vector<8xf32>
    %72 = vector.shape_cast %71 : vector<8xf32> to vector<8x1xf32>
    %cst_66 = arith.constant 2.560000e+02 : f32
    %73 = vector.broadcast %cst_66 : f32 to vector<8x1xf32>
    %74 = arith.divf %72, %73 : vector<8x1xf32>
    %cst_67 = arith.constant 9.99999974E-6 : f32
    %75 = vector.broadcast %cst_67 : f32 to vector<8x1xf32>
    %76 = arith.addf %74, %75 : vector<8x1xf32>
    %77 = math.rsqrt %76 : vector<8x1xf32>
    %c0_68 = arith.constant 0 : index
    %c0_69 = arith.constant 0 : index
    %78 = vector.load %arg3[%c0_68, %c0_69] : memref<8x1xf32, #tpu.memory_space<vmem>>, vector<8x1xf32>
    %79 = arith.mulf %77, %78 : vector<8x1xf32>
    %80 = vector.broadcast %79 : vector<8x1xf32> to vector<8x256xf32>
    %81 = arith.mulf %69, %80 : vector<8x256xf32>
    %c0_70 = arith.constant 0 : index
    %c0_71 = arith.constant 0 : index
    %82 = vector.load %arg4[%c0_70, %c0_71] : memref<8x1xf32, #tpu.memory_space<vmem>>, vector<8x1xf32>
    %83 = vector.broadcast %82 : vector<8x1xf32> to vector<8x256xf32>
    %84 = arith.addf %81, %83 : vector<8x256xf32>
    %cst_72 = arith.constant 0.000000e+00 : f32
    %85 = vector.broadcast %cst_72 : f32 to vector<8x256xf32>
    %86 = arith.maximumf %84, %85 : vector<8x256xf32>
    %c0_73 = arith.constant 0 : index
    %c0_74 = arith.constant 0 : index
    %c0_75 = arith.constant 0 : index
    %87 = vector.load %arg5[%c0_73, %c0_74, %c0_75] : memref<1x8x256xf32, #tpu.memory_space<vmem>>, vector<1x8x256xf32>
    %88 = vector.shape_cast %87 : vector<1x8x256xf32> to vector<8x256xf32>
    %89 = vector.shape_cast %86 : vector<8x256xf32> to vector<1x8x256xf32>
    tpu.vector_store %arg5[%c0_73, %c0_74, %c0_75], %89 {strides = array<i32>} : memref<1x8x256xf32, #tpu.memory_space<vmem>>, vector<1x8x256xf32>,
    return
  }
  func.func @transform_0(%arg0: i32) -> (i32, i32, i32, i32) {
    %c0_i32 = arith.constant 0 : i32
    %c0_i32_0 = arith.constant 0 : i32
    %c0_i32_1 = arith.constant 0 : i32
    %c0_i32_2 = arith.constant 0 : i32
    return %arg0, %c0_i32, %c0_i32_0, %c0_i32_1 : i32, i32, i32, i32
  }
  func.func @transform_1(%arg0: i32) -> (i32, i32, i32) {
    %c0_i32 = arith.constant 0 : i32
    %c0_i32_0 = arith.constant 0 : i32
    %c0_i32_1 = arith.constant 0 : i32
    %c0_i32_2 = arith.constant 0 : i32
    return %c0_i32, %c0_i32_0, %c0_i32_1 : i32, i32, i32
  }
  func.func @transform_2(%arg0: i32) -> (i32, i32) {
    %c0_i32 = arith.constant 0 : i32
    %c0_i32_0 = arith.constant 0 : i32
    %c0_i32_1 = arith.constant 0 : i32
    return %c0_i32, %c0_i32_0 : i32, i32
  }
  func.func @transform_3(%arg0: i32) -> (i32, i32) {
    %c0_i32 = arith.constant 0 : i32
    %c0_i32_0 = arith.constant 0 : i32
    %c0_i32_1 = arith.constant 0 : i32
    return %c0_i32, %c0_i32_0 : i32, i32
  }
  func.func @transform_4(%arg0: i32) -> (i32, i32, i32) {
    %c0_i32 = arith.constant 0 : i32
    %c0_i32_0 = arith.constant 0 : i32
    %c0_i32_1 = arith.constant 0 : i32
    return %arg0, %c0_i32, %c0_i32_0 : i32, i32, i32
  }
}

</mosaic_0001>

<llo_original>
// kernel: tpu_custom_call.1
$region0: #{tpu_custom_call.1}
  #allocation0 [shape = 'u32[]', space=smem, size = 0x4, offset = 0x4, fixed_abs, tag = 'smem constant byte address 0x4 - core index']
  #allocation1 [shape = 'u32[144,128]{1,0:T(1,128)}', space=vmem, size = 0x12000, scoped, tag = 'internal scratch']
  %s0 = inlined_call_operand.vmem [shape: f32[2,18,18,4], index: 0, kind: input, shape index: {}]
  %s1 = inlined_call_operand.vmem [shape: f32[9,8,4], index: 1, kind: input, shape index: {}]
  %s2 = inlined_call_operand.vmem [shape: f32[8,1], index: 2, kind: input, shape index: {}]
  %s3 = inlined_call_operand.vmem [shape: f32[8,1], index: 3, kind: input, shape index: {}]
  %s4 = inlined_call_operand.hbm [shape: f32[2,8,256], index: 4, kind: output, shape index: {}]
  %s5 = sld [smem:[#allocation0]]
  $region49: #{tpu_custom_call.1} parent=0
    _
  %s7 = ssub.s32 1, %s5
  %s8 = scalar_select 0, %s7, %s5
  $region1: #{tpu_custom_call.1} parent=0
    #allocation2 [shape = 'u8[16384]{0}', space=vmem, size = 0x4000, scoped, tag = 'output window, operand 0']
    #allocation3 [shape = 's32[2]{0}', space=sflag, size = 0x8, scoped, tag = 'scoped memory for tpu_custom_call.1']
    %9 = vsyncpa [#allocation3], 0
    %s10 = scalar_lea.sflag [#allocation3], 1
    %11 = vsyncpa %s10, 0
    loop: start=0, step=1, limit=4
    $region2: #{tpu_custom_call.1} parent=1 // loop_pre_header
      _
    $region3: #{tpu_custom_call.1} parent=1 // loop_header
      %s13 = sphi 0, %s17
      %p14 = scmp.ge.s32.totalorder %s13, 4
      %s23 = sphi 0, %s25
      %s26 = sphi 0, %s23
      %s27 = sphi 0, %s26
      %s43 = sphi 0, %s27
      %s47 = sphi 0, %s47
      %s49 = sphi 0, %s47
      %s50 = sphi 0, %s49
      %s64 = sphi 0, %s50
      %s68 = sphi 0, %s68
      %s70 = sphi 0, %s68
      %s71 = sphi 0, %s70
      %s85 = sphi 0, %s71
      %s89 = sphi 0, %s89
      %s91 = sphi 0, %s89
      %s92 = sphi 0, %s91
      %s106 = sphi 0, %s92
      %s112 = sphi 0, %s114
      %s115 = sphi 0, %s112
      %s116 = sphi 0, %s115
      %s132 = sphi 0, %s116
    $region4: #{tpu_custom_call.1} parent=1 // loop_header_branch
      %16 = sbr.rel (%p14) target = $region8
    $region5: #{tpu_custom_call.1} parent=1 // loop_body
      %s18 = ssub.s32 %s13, 1
      %s19 = ssub.s32 %s13, 2
      %s20 = sadd.s32 %s13, 1
      %s21 = ssub.s32 %s13, %s20
      %p22 = scmp.eq.s32.totalorder %s21, 0
      %s24 = sadd.s32 %s23, 1
      %s25 = scalar_select %p22, %s23, %s24
      %p28 = pneg %p22
      %p29 = scmp.eq.s32.totalorder %s13, 1
      %p30 = por %p28, %p29
      %p31 = scmp.ne.s32.totalorder %s23, %s26
      %p32 = scmp.eq.s32.totalorder %s13, 0
      %p33 = por %p31, %p32
      %p34 = scmp.ne.s32.totalorder %s23, %s26
      %p35 = scmp.eq.s32.totalorder %s18, 1
      %p36 = por %p34, %p35
      %p37 = scmp.ne.s32.totalorder %s26, %s27
      %p38 = scmp.eq.s32.totalorder %s18, 0
      %p39 = por %p37, %p38
      %p40 = scmp.ne.s32.totalorder %s26, %s27
      %p41 = scmp.eq.s32.totalorder %s19, 1
      %p42 = por %p40, %p41
      %p44 = scmp.ne.s32.totalorder %s27, %s43
      %p45 = scmp.eq.s32.totalorder %s19, 0
      %p46 = por %p44, %p45
      %s48 = sadd.s32 %s47, 1
      %p51 = scmp.eq.s32.totalorder %s13, 1
      %p52 = scmp.ne.s32.totalorder %s47, %s49
      %p53 = scmp.eq.s32.totalorder %s13, 0
      %p54 = por %p52, %p53
      %p55 = scmp.ne.s32.totalorder %s47, %s49
      %p56 = scmp.eq.s32.totalorder %s18, 1
      %p57 = por %p55, %p56
      %p58 = scmp.ne.s32.totalorder %s49, %s50
      %p59 = scmp.eq.s32.totalorder %s18, 0
      %p60 = por %p58, %p59
      %p61 = scmp.ne.s32.totalorder %s49, %s50
      %p62 = scmp.eq.s32.totalorder %s19, 1
      %p63 = por %p61, %p62
      %p65 = scmp.ne.s32.totalorder %s50, %s64
      %p66 = scmp.eq.s32.totalorder %s19, 0
      %p67 = por %p65, %p66
      %s69 = sadd.s32 %s68, 1
      %p72 = scmp.eq.s32.totalorder %s13, 1
      %p73 = scmp.ne.s32.totalorder %s68, %s70
      %p74 = scmp.eq.s32.totalorder %s13, 0
      %p75 = por %p73, %p74
      %p76 = scmp.ne.s32.totalorder %s68, %s70
      %p77 = scmp.eq.s32.totalorder %s18, 1
      %p78 = por %p76, %p77
      %p79 = scmp.ne.s32.totalorder %s70, %s71
      %p80 = scmp.eq.s32.totalorder %s18, 0
      %p81 = por %p79, %p80
      %p82 = scmp.ne.s32.totalorder %s70, %s71
      %p83 = scmp.eq.s32.totalorder %s19, 1
      %p84 = por %p82, %p83
      %p86 = scmp.ne.s32.totalorder %s71, %s85
      %p87 = scmp.eq.s32.totalorder %s19, 0
      %p88 = por %p86, %p87
      %s90 = sadd.s32 %s89, 1
      %p93 = scmp.eq.s32.totalorder %s13, 1
      %p94 = scmp.ne.s32.totalorder %s89, %s91
      %p95 = scmp.eq.s32.totalorder %s13, 0
      %p96 = por %p94, %p95
      %p97 = scmp.ne.s32.totalorder %s89, %s91
      %p98 = scmp.eq.s32.totalorder %s18, 1
      %p99 = por %p97, %p98
      %p100 = scmp.ne.s32.totalorder %s91, %s92
      %p101 = scmp.eq.s32.totalorder %s18, 0
      %p102 = por %p100, %p101
      %p103 = scmp.ne.s32.totalorder %s91, %s92
      %p104 = scmp.eq.s32.totalorder %s19, 1
      %p105 = por %p103, %p104
      %p107 = scmp.ne.s32.totalorder %s92, %s106
      %p108 = scmp.eq.s32.totalorder %s19, 0
      %p109 = por %p107, %p108
      %s110 = ssub.s32 %s13, %s20
      %p111 = scmp.eq.s32.totalorder %s110, 0
      %s113 = sadd.s32 %s112, 1
      %s114 = scalar_select %p111, %s112, %s113
      %p117 = pneg %p111
      %p118 = scmp.eq.s32.totalorder %s13, 1
      %p119 = por %p117, %p118
      %p120 = scmp.ne.s32.totalorder %s112, %s115
      %p121 = scmp.eq.s32.totalorder %s13, 0
      %p122 = por %p120, %p121
      %p123 = scmp.ne.s32.totalorder %s112, %s115
      %p124 = scmp.eq.s32.totalorder %s18, 1
      %p125 = por %p123, %p124
      %p126 = scmp.ne.s32.totalorder %s115, %s116
      %p127 = scmp.eq.s32.totalorder %s18, 0
      %p128 = por %p126, %p127
      %p129 = scmp.ne.s32.totalorder %s115, %s116
      %p130 = scmp.eq.s32.totalorder %s19, 1
      %p131 = por %p129, %p130
      %p133 = scmp.ne.s32.totalorder %s116, %s132
      %p134 = scmp.eq.s32.totalorder %s19, 0
      %p135 = por %p133, %p134
      %p136 = scmp.le.s32.totalorder 1, %s13
      %p137 = scmp.lt.s32.totalorder %s13, 3
      %p138 = pnand %p136, %p137
      %p139 = pneg %p138
      // Predicated region
      $region9: #{tpu_custom_call.1} parent=5 // pred_check
        _
      $region10: #{tpu_custom_call.1} parent=5 // pred_check_branch
        %141 = sbr.rel (%p138) target = $region12
      $region11: #{tpu_custom_call.1} parent=5 // pred_region
        %s142 = ssub.s32 %s13, 1
        // Predicated region
        $region13: #{tpu_custom_call.1} parent=11 // pred_check
          %p143 = pneg %p60
        $region14: #{tpu_custom_call.1} parent=11 // pred_check_branch
          %145 = sbr.rel (%p143) target = $region16
        $region15: #{tpu_custom_call.1} parent=11 // pred_region
          _
        $region16: #{tpu_custom_call.1} parent=11 // pred_fallthru
          _
        // Predicated region
        $region17: #{tpu_custom_call.1} parent=11 // pred_check
          %p146 = pneg %p81
        $region18: #{tpu_custom_call.1} parent=11 // pred_check_branch
          %148 = sbr.rel (%p146) target = $region20
        $region19: #{tpu_custom_call.1} parent=11 // pred_region
          _
        $region20: #{tpu_custom_call.1} parent=11 // pred_fallthru
          _
        // Predicated region
        $region21: #{tpu_custom_call.1} parent=11 // pred_check
          %p149 = pneg %p102
        $region22: #{tpu_custom_call.1} parent=11 // pred_check_branch
          %151 = sbr.rel (%p149) target = $region24
        $region23: #{tpu_custom_call.1} parent=11 // pred_region
          _
        $region24: #{tpu_custom_call.1} parent=11 // pred_fallthru
          _
      $region12: #{tpu_custom_call.1} parent=5 // pred_fallthru
        _
      %p152 = scmp.lt.s32.totalorder %s13, 2
      // Predicated region
      $region25: #{tpu_custom_call.1} parent=5 // pred_check
        %p153 = pneg %p152
      $region26: #{tpu_custom_call.1} parent=5 // pred_check_branch
        %155 = sbr.rel (%p153) target = $region28
      $region27: #{tpu_custom_call.1} parent=5 // pred_region
        // Predicated region
        $region29: #{tpu_custom_call.1} parent=27 // pred_check
          %p156 = pneg %p33
        $region30: #{tpu_custom_call.1} parent=27 // pred_check_branch
          %158 = sbr.rel (%p156) target = $region32
        $region31: #{tpu_custom_call.1} parent=27 // pred_region
          %p159 = scmp.lt.s32.totalorder %s13, 1
          %s160 = scalar_select %p159, %s13, 1
          %s161 = smul.addr %s160, 54
          %s162 = smul.addr %s161, 8
          %s163 = scalar_lea.vmem %s0, %s162
        $region32: #{tpu_custom_call.1} parent=27 // pred_fallthru
          _
      $region28: #{tpu_custom_call.1} parent=5 // pred_fallthru
        _
      %p164 = scmp.le.s32.totalorder 1, %s13
      %p165 = scmp.lt.s32.totalorder %s13, 3
      %p166 = pnand %p164, %p165
      %p167 = pneg %p166
      // Predicated region
      $region33: #{tpu_custom_call.1} parent=5 // pred_check
        _
      $region34: #{tpu_custom_call.1} parent=5 // pred_check_branch
        %169 = sbr.rel (%p166) target = $region36
      $region35: #{tpu_custom_call.1} parent=5 // pred_region
        %s170 = ssub.s32 %s13, 1
        %p171 = scmp.lt.s32.totalorder %s18, 1
        %s172 = scalar_select %p171, %s18, 1
        %s173 = smul.addr %s172, 54
        %s174 = smul.addr %s173, 8
        %s175 = scalar_lea.vmem %s0, %s174
        %p176 = pneg %p39
        %p177 = pneg %p36
        %p178 = pneg %p60
        %p179 = pneg %p57
        %p180 = pneg %p81
        %p181 = pneg %p78
        %p182 = pneg %p102
        %p183 = pneg %p99
        %p184 = pneg %p128
        %p185 = pneg %p125
        %s186 = sand.u32 %s115, 1
        %s187 = scalar_lea.sflag [#allocation3], %s186
        %s188 = sand.u32 %s115, 1
        %s189 = smul.addr %s188, 16
        %s190 = scalar_lea.vmem [#allocation2], %s189
        %p191 = scmp.lt.s32.totalorder %s18, 1
        %s192 = scalar_select %p191, %s18, 1
        %s193 = smul.addr %s192, 54
        %s194 = smul.addr %s193, 8
        %s195 = scalar_lea.vmem %s0, %s194
        %v196 = vld [vmem:[%s195] sm:$0xff]
        %v197 = vld [vmem:[%s195 + $0x8] sm:$0xff]
        %v198 = vld [vmem:[%s195 + $0x18] sm:$0xff]
        %v199 = vld [vmem:[%s195 + $0x20] sm:$0xff]
        %v200 = vld [vmem:[%s195 + $0x30] sm:$0xff]
        %v201 = vld [vmem:[%s195 + $0x38] sm:$0xff]
        %v202 = vld [vmem:[%s195 + $0x48] sm:$0xff]
        %v203 = vld [vmem:[%s195 + $0x50] sm:$0xff]
        %v204 = vld [vmem:[%s195 + $0x60] sm:$0xff]
        %v205 = vld [vmem:[%s195 + $0x68] sm:$0xff]
        %v206 = vld [vmem:[%s195 + $0x78] sm:$0xff]
        %v207 = vld [vmem:[%s195 + $0x80] sm:$0xff]
        %v208 = vld [vmem:[%s195 + $0x90] sm:$0xff]
        %v209 = vld [vmem:[%s195 + $0x98] sm:$0xff]
        %v210 = vld [vmem:[%s195 + $0xa8] sm:$0xff]
        %v211 = vld [vmem:[%s195 + $0xb0] sm:$0xff]
        %v212 = vld [vmem:[%s195 + $0xc0] sm:$0xff]
        %v213 = vld [vmem:[%s195 + $0xc8] sm:$0xff]
        %v214 = vld [vmem:[%s195 + $0xd8] sm:$0xff]
        %v215 = vld [vmem:[%s195 + $0xe0] sm:$0xff]
        %v216 = vld [vmem:[%s195 + $0xf0] sm:$0xff]
        %v217 = vld [vmem:[%s195 + $0xf8] sm:$0xff]
        %v218 = vld [vmem:[%s195 + $0x108] sm:$0xff]
        %v219 = vld [vmem:[%s195 + $0x110] sm:$0xff]
        %v220 = vld [vmem:[%s195 + $0x120] sm:$0xff]
        %v221 = vld [vmem:[%s195 + $0x128] sm:$0xff]
        %v222 = vld [vmem:[%s195 + $0x138] sm:$0xff]
        %v223 = vld [vmem:[%s195 + $0x140] sm:$0xff]
        %v224 = vld [vmem:[%s195 + $0x150] sm:$0xff]
        %v225 = vld [vmem:[%s195 + $0x158] sm:$0xff]
        %v226 = vld [vmem:[%s195 + $0x168] sm:$0xff]
        %v227 = vld [vmem:[%s195 + $0x170] sm:$0xff]
        %v228 = vld [vmem:[%s1] sm:$0xff]
        %v229 = vld [vmem:[%s195 + $0x1] sm:$0xff]
        %v230 = vld [vmem:[%s195 + $0x9] sm:$0xff]
        %v231 = vld [vmem:[%s195 + $0x19] sm:$0xff]
        %v232 = vld [vmem:[%s195 + $0x21] sm:$0xff]
        %v233 = vld [vmem:[%s195 + $0x31] sm:$0xff]
        %v234 = vld [vmem:[%s195 + $0x39] sm:$0xff]
        %v235 = vld [vmem:[%s195 + $0x49] sm:$0xff]
        %v236 = vld [vmem:[%s195 + $0x51] sm:$0xff]
        %v237 = vld [vmem:[%s195 + $0x61] sm:$0xff]
        %v238 = vld [vmem:[%s195 + $0x69] sm:$0xff]
        %v239 = vld [vmem:[%s195 + $0x79] sm:$0xff]
        %v240 = vld [vmem:[%s195 + $0x81] sm:$0xff]
        %v241 = vld [vmem:[%s195 + $0x91] sm:$0xff]
        %v242 = vld [vmem:[%s195 + $0x99] sm:$0xff]
        %v243 = vld [vmem:[%s195 + $0xa9] sm:$0xff]
        %v244 = vld [vmem:[%s195 + $0xb1] sm:$0xff]
        %v245 = vld [vmem:[%s195 + $0xc1] sm:$0xff]
        %v246 = vld [vmem:[%s195 + $0xc9] sm:$0xff]
        %v247 = vld [vmem:[%s195 + $0xd9] sm:$0xff]
        %v248 = vld [vmem:[%s195 + $0xe1] sm:$0xff]
        %v249 = vld [vmem:[%s195 + $0xf1] sm:$0xff]
        %v250 = vld [vmem:[%s195 + $0xf9] sm:$0xff]
        %v251 = vld [vmem:[%s195 + $0x109] sm:$0xff]
        %v252 = vld [vmem:[%s195 + $0x111] sm:$0xff]
        %v253 = vld [vmem:[%s195 + $0x121] sm:$0xff]
        %v254 = vld [vmem:[%s195 + $0x129] sm:$0xff]
        %v255 = vld [vmem:[%s195 + $0x139] sm:$0xff]
        %v256 = vld [vmem:[%s195 + $0x141] sm:$0xff]
        %v257 = vld [vmem:[%s195 + $0x151] sm:$0xff]
        %v258 = vld [vmem:[%s195 + $0x159] sm:$0xff]
        %v259 = vld [vmem:[%s195 + $0x169] sm:$0xff]
        %v260 = vld [vmem:[%s195 + $0x171] sm:$0xff]
        %s261 = scalar_lea.vmem %s1, 8
        %v262 = vld [vmem:[%s261] sm:$0xff]
        %vm263 = vcmask 31744
        %v265 = vsel %vm263, %v262, 0
        %v268 = vsel %vm263, %v229, 0
        %v271 = vsel %vm263, %v230, 0
        %v274 = vsel %vm263, %v231, 0
        %v277 = vsel %vm263, %v232, 0
        %v280 = vsel %vm263, %v233, 0
        %v283 = vsel %vm263, %v234, 0
        %v286 = vsel %vm263, %v235, 0
        %v289 = vsel %vm263, %v236, 0
        %v292 = vsel %vm263, %v237, 0
        %v295 = vsel %vm263, %v238, 0
        %v298 = vsel %vm263, %v239, 0
        %v301 = vsel %vm263, %v240, 0
        %v304 = vsel %vm263, %v241, 0
        %v307 = vsel %vm263, %v242, 0
        %v310 = vsel %vm263, %v243, 0
        %v313 = vsel %vm263, %v244, 0
        %v316 = vsel %vm263, %v245, 0
        %v319 = vsel %vm263, %v246, 0
        %v322 = vsel %vm263, %v247, 0
        %v325 = vsel %vm263, %v248, 0
        %v328 = vsel %vm263, %v249, 0
        %v331 = vsel %vm263, %v250, 0
        %v334 = vsel %vm263, %v251, 0
        %v337 = vsel %vm263, %v252, 0
        %v340 = vsel %vm263, %v253, 0
        %v343 = vsel %vm263, %v254, 0
        %v346 = vsel %vm263, %v255, 0
        %v349 = vsel %vm263, %v256, 0
        %v352 = vsel %vm263, %v257, 0
        %v355 = vsel %vm263, %v258, 0
        %v358 = vsel %vm263, %v259, 0
        %v361 = vsel %vm263, %v260, 0
        %363 = vmatprep.subr.mxu0 0.0
        %364 = vmatpush1.xpose.msra.mxu0 %v268
        %365 = vmatprep.subr.mxu0 0.0
        %366 = vmatpush1.xpose.msra.mxu0 %v271
        %367 = vmatprep.subr.mxu0 0.0
        %368 = vmatpush1.xpose.msra.mxu0 %v274
        %369 = vmatprep.subr.mxu0 0.0
        %370 = vmatpush1.xpose.msra.mxu0 %v277
        %371 = vmatprep.subr.mxu0 0.0
        %372 = vmatpush1.xpose.msra.mxu0 %v280
        %373 = vmatprep.subr.mxu0 0.0
        %374 = vmatpush1.xpose.msra.mxu0 %v283
        %375 = vmatprep.subr.mxu0 0.0
        %376 = vmatpush1.xpose.msra.mxu0 %v286
        %377 = vmatprep.subr.mxu0 0.0
        %378 = vmatpush1.xpose.msra.mxu0 %v289
        %379 = vmatprep.subr.mxu0 0.0
        %380 = vmatpush1.xpose.msra.mxu0 %v292
        %381 = vmatprep.subr.mxu0 0.0
        %382 = vmatpush1.xpose.msra.mxu0 %v295
        %383 = vmatprep.subr.mxu0 0.0
        %384 = vmatpush1.xpose.msra.mxu0 %v298
        %385 = vmatprep.subr.mxu0 0.0
        %386 = vmatpush1.xpose.msra.mxu0 %v301
        %387 = vmatprep.subr.mxu0 0.0
        %388 = vmatpush1.xpose.msra.mxu0 %v304
        %389 = vmatprep.subr.mxu0 0.0
        %390 = vmatpush1.xpose.msra.mxu0 %v307
        %391 = vmatprep.subr.mxu0 0.0
        %392 = vmatpush1.xpose.msra.mxu0 %v310
        %393 = vmatprep.subr.mxu0 0.0
        %394 = vmatpush1.xpose.msra.mxu0 %v313
        %395 = vmatprep.subr.mxu0 0.0
        %396 = vmatpush1.xpose.msra.mxu0 %v316
        %397 = vmatprep.subr.mxu0 0.0
        %398 = vmatpush1.xpose.msra.mxu0 %v319
        %399 = vmatprep.subr.mxu0 0.0
        %400 = vmatpush1.xpose.msra.mxu0 %v322
        %401 = vmatprep.subr.mxu0 0.0
        %402 = vmatpush1.xpose.msra.mxu0 %v325
        %403 = vmatprep.subr.mxu0 0.0
        %404 = vmatpush1.xpose.msra.mxu0 %v328
        %405 = vmatprep.subr.mxu0 0.0
        %406 = vmatpush1.xpose.msra.mxu0 %v331
        %407 = vmatprep.subr.mxu0 0.0
        %408 = vmatpush1.xpose.msra.mxu0 %v334
        %409 = vmatprep.subr.mxu0 0.0
        %410 = vmatpush1.xpose.msra.mxu0 %v337
        %411 = vmatprep.subr.mxu0 0.0
        %412 = vmatpush1.xpose.msra.mxu0 %v340
        %413 = vmatprep.subr.mxu0 0.0
        %414 = vmatpush1.xpose.msra.mxu0 %v343
        %415 = vmatprep.subr.mxu0 0.0
        %416 = vmatpush1.xpose.msra.mxu0 %v346
        %417 = vmatprep.subr.mxu0 0.0
        %418 = vmatpush1.xpose.msra.mxu0 %v349
        %419 = vmatprep.subr.mxu0 0.0
        %420 = vmatpush1.xpose.msra.mxu0 %v352
        %421 = vmatprep.subr.mxu0 0.0
        %422 = vmatpush1.xpose.msra.mxu0 %v355
        %423 = vmatprep.subr.mxu0 0.0
        %424 = vmatpush1.xpose.msra.mxu0 %v358
        %425 = vmatprep.subr.mxu0 0.0
        %426 = vmatpush1.xpose.msra.mxu0 %v361
        %427 = vmatprep.mubr.f32.mxu0 0.0
        %428 = vmatmul.mubr.f32.gmra.mrb[0].mxu0 %v265
        %v429 = vpop.f32.mrb[0].mxu0
        %v430 = vadd.f32 0.0, %v429
        %v431 = vpop.f32.mrb[0].mxu0
        %v432 = vadd.f32 0.0, %v431
        %433 = vdwg.mxu0
        %v435 = vsel %vm263, %v228, 0
        %v438 = vsel %vm263, %v196, 0
        %v441 = vsel %vm263, %v197, 0
        %v444 = vsel %vm263, %v198, 0
        %v447 = vsel %vm263, %v199, 0
        %v450 = vsel %vm263, %v200, 0
        %v453 = vsel %vm263, %v201, 0
        %v456 = vsel %vm263, %v202, 0
        %v459 = vsel %vm263, %v203, 0
        %v462 = vsel %vm263, %v204, 0
        %v465 = vsel %vm263, %v205, 0
        %v468 = vsel %vm263, %v206, 0
        %v471 = vsel %vm263, %v207, 0
        %v474 = vsel %vm263, %v208, 0
        %v477 = vsel %vm263, %v209, 0
        %v480 = vsel %vm263, %v210, 0
        %v483 = vsel %vm263, %v211, 0
        %v486 = vsel %vm263, %v212, 0
        %v489 = vsel %vm263, %v213, 0
        %v492 = vsel %vm263, %v214, 0
        %v495 = vsel %vm263, %v215, 0
        %v498 = vsel %vm263, %v216, 0
        %v501 = vsel %vm263, %v217, 0
        %v504 = vsel %vm263, %v218, 0
        %v507 = vsel %vm263, %v219, 0
        %v510 = vsel %vm263, %v220, 0
        %v513 = vsel %vm263, %v221, 0
        %v516 = vsel %vm263, %v222, 0
        %v519 = vsel %vm263, %v223, 0
        %v522 = vsel %vm263, %v224, 0
        %v525 = vsel %vm263, %v225, 0
        %v528 = vsel %vm263, %v226, 0
        %v531 = vsel %vm263, %v227, 0
        %533 = vmatprep.subr.mxu0 0.0
        %534 = vmatpush1.xpose.msra.mxu0 %v438
        %535 = vmatprep.subr.mxu0 0.0
        %536 = vmatpush1.xpose.msra.mxu0 %v441
        %537 = vmatprep.subr.mxu0 0.0
        %538 = vmatpush1.xpose.msra.mxu0 %v444
        %539 = vmatprep.subr.mxu0 0.0
        %540 = vmatpush1.xpose.msra.mxu0 %v447
        %541 = vmatprep.subr.mxu0 0.0
        %542 = vmatpush1.xpose.msra.mxu0 %v450
        %543 = vmatprep.subr.mxu0 0.0
        %544 = vmatpush1.xpose.msra.mxu0 %v453
        %545 = vmatprep.subr.mxu0 0.0
        %546 = vmatpush1.xpose.msra.mxu0 %v456
        %547 = vmatprep.subr.mxu0 0.0
        %548 = vmatpush1.xpose.msra.mxu0 %v459
        %549 = vmatprep.subr.mxu0 0.0
        %550 = vmatpush1.xpose.msra.mxu0 %v462
        %551 = vmatprep.subr.mxu0 0.0
        %552 = vmatpush1.xpose.msra.mxu0 %v465
        %553 = vmatprep.subr.mxu0 0.0
        %554 = vmatpush1.xpose.msra.mxu0 %v468
        %555 = vmatprep.subr.mxu0 0.0
        %556 = vmatpush1.xpose.msra.mxu0 %v471
        %557 = vmatprep.subr.mxu0 0.0
        %558 = vmatpush1.xpose.msra.mxu0 %v474
        %559 = vmatprep.subr.mxu0 0.0
        %560 = vmatpush1.xpose.msra.mxu0 %v477
        %561 = vmatprep.subr.mxu0 0.0
        %562 = vmatpush1.xpose.msra.mxu0 %v480
        %563 = vmatprep.subr.mxu0 0.0
        %564 = vmatpush1.xpose.msra.mxu0 %v483
        %565 = vmatprep.subr.mxu0 0.0
        %566 = vmatpush1.xpose.msra.mxu0 %v486
        %567 = vmatprep.subr.mxu0 0.0
        %568 = vmatpush1.xpose.msra.mxu0 %v489
        %569 = vmatprep.subr.mxu0 0.0
        %570 = vmatpush1.xpose.msra.mxu0 %v492
        %571 = vmatprep.subr.mxu0 0.0
        %572 = vmatpush1.xpose.msra.mxu0 %v495
        %573 = vmatprep.subr.mxu0 0.0
        %574 = vmatpush1.xpose.msra.mxu0 %v498
        %575 = vmatprep.subr.mxu0 0.0
        %576 = vmatpush1.xpose.msra.mxu0 %v501
        %577 = vmatprep.subr.mxu0 0.0
        %578 = vmatpush1.xpose.msra.mxu0 %v504
        %579 = vmatprep.subr.mxu0 0.0
        %580 = vmatpush1.xpose.msra.mxu0 %v507
        %581 = vmatprep.subr.mxu0 0.0
        %582 = vmatpush1.xpose.msra.mxu0 %v510
        %583 = vmatprep.subr.mxu0 0.0
        %584 = vmatpush1.xpose.msra.mxu0 %v513
        %585 = vmatprep.subr.mxu0 0.0
        %586 = vmatpush1.xpose.msra.mxu0 %v516
        %587 = vmatprep.subr.mxu0 0.0
        %588 = vmatpush1.xpose.msra.mxu0 %v519
        %589 = vmatprep.subr.mxu0 0.0
        %590 = vmatpush1.xpose.msra.mxu0 %v522
        %591 = vmatprep.subr.mxu0 0.0
        %592 = vmatpush1.xpose.msra.mxu0 %v525
        %593 = vmatprep.subr.mxu0 0.0
        %594 = vmatpush1.xpose.msra.mxu0 %v528
        %595 = vmatprep.subr.mxu0 0.0
        %596 = vmatpush1.xpose.msra.mxu0 %v531
        %597 = vmatprep.mubr.f32.mxu0 0.0
        %598 = vmatmul.mubr.f32.gmra.mrb[0].mxu0 %v435
        %v599 = vpop.f32.mrb[0].mxu0
        %v600 = vadd.f32 %v430, %v599
        %v601 = vpop.f32.mrb[0].mxu0
        %v602 = vadd.f32 %v432, %v601
        %603 = vdwg.mxu0
        %v604 = vld [vmem:[%s195 + $0x2] sm:$0xff]
        %v605 = vld [vmem:[%s195 + $0xa] sm:$0xff]
        %v606 = vld [vmem:[%s195 + $0x1a] sm:$0xff]
        %v607 = vld [vmem:[%s195 + $0x22] sm:$0xff]
        %v608 = vld [vmem:[%s195 + $0x32] sm:$0xff]
        %v609 = vld [vmem:[%s195 + $0x3a] sm:$0xff]
        %v610 = vld [vmem:[%s195 + $0x4a] sm:$0xff]
        %v611 = vld [vmem:[%s195 + $0x52] sm:$0xff]
        %v612 = vld [vmem:[%s195 + $0x62] sm:$0xff]
        %v613 = vld [vmem:[%s195 + $0x6a] sm:$0xff]
        %v614 = vld [vmem:[%s195 + $0x7a] sm:$0xff]
        %v615 = vld [vmem:[%s195 + $0x82] sm:$0xff]
        %v616 = vld [vmem:[%s195 + $0x92] sm:$0xff]
        %v617 = vld [vmem:[%s195 + $0x9a] sm:$0xff]
        %v618 = vld [vmem:[%s195 + $0xaa] sm:$0xff]
        %v619 = vld [vmem:[%s195 + $0xb2] sm:$0xff]
        %v620 = vld [vmem:[%s195 + $0xc2] sm:$0xff]
        %v621 = vld [vmem:[%s195 + $0xca] sm:$0xff]
        %v622 = vld [vmem:[%s195 + $0xda] sm:$0xff]
        %v623 = vld [vmem:[%s195 + $0xe2] sm:$0xff]
        %v624 = vld [vmem:[%s195 + $0xf2] sm:$0xff]
        %v625 = vld [vmem:[%s195 + $0xfa] sm:$0xff]
        %v626 = vld [vmem:[%s195 + $0x10a] sm:$0xff]
        %v627 = vld [vmem:[%s195 + $0x112] sm:$0xff]
        %v628 = vld [vmem:[%s195 + $0x122] sm:$0xff]
        %v629 = vld [vmem:[%s195 + $0x12a] sm:$0xff]
        %v630 = vld [vmem:[%s195 + $0x13a] sm:$0xff]
        %v631 = vld [vmem:[%s195 + $0x142] sm:$0xff]
        %v632 = vld [vmem:[%s195 + $0x152] sm:$0xff]
        %v633 = vld [vmem:[%s195 + $0x15a] sm:$0xff]
        %v634 = vld [vmem:[%s195 + $0x16a] sm:$0xff]
        %v635 = vld [vmem:[%s195 + $0x172] sm:$0xff]
        %s636 = scalar_lea.vmem %s1, 16
        %v637 = vld [vmem:[%s636] sm:$0xff]
        %v639 = vsel %vm263, %v637, 0
        %v642 = vsel %vm263, %v604, 0
        %v645 = vsel %vm263, %v605, 0
        %v648 = vsel %vm263, %v606, 0
        %v651 = vsel %vm263, %v607, 0
        %v654 = vsel %vm263, %v608, 0
        %v657 = vsel %vm263, %v609, 0
        %v660 = vsel %vm263, %v610, 0
        %v663 = vsel %vm263, %v611, 0
        %v666 = vsel %vm263, %v612, 0
        %v669 = vsel %vm263, %v613, 0
        %v672 = vsel %vm263, %v614, 0
        %v675 = vsel %vm263, %v615, 0
        %v678 = vsel %vm263, %v616, 0
        %v681 = vsel %vm263, %v617, 0
        %v684 = vsel %vm263, %v618, 0
        %v687 = vsel %vm263, %v619, 0
        %v690 = vsel %vm263, %v620, 0
        %v693 = vsel %vm263, %v621, 0
        %v696 = vsel %vm263, %v622, 0
        %v699 = vsel %vm263, %v623, 0
        %v702 = vsel %vm263, %v624, 0
        %v705 = vsel %vm263, %v625, 0
        %v708 = vsel %vm263, %v626, 0
        %v711 = vsel %vm263, %v627, 0
        %v714 = vsel %vm263, %v628, 0
        %v717 = vsel %vm263, %v629, 0
        %v720 = vsel %vm263, %v630, 0
        %v723 = vsel %vm263, %v631, 0
        %v726 = vsel %vm263, %v632, 0
        %v729 = vsel %vm263, %v633, 0
        %v732 = vsel %vm263, %v634, 0
        %v735 = vsel %vm263, %v635, 0
        %737 = vmatprep.subr.mxu0 0.0
        %738 = vmatpush1.xpose.msra.mxu0 %v642
        %739 = vmatprep.subr.mxu0 0.0
        %740 = vmatpush1.xpose.msra.mxu0 %v645
        %741 = vmatprep.subr.mxu0 0.0
        %742 = vmatpush1.xpose.msra.mxu0 %v648
        %743 = vmatprep.subr.mxu0 0.0
        %744 = vmatpush1.xpose.msra.mxu0 %v651
        %745 = vmatprep.subr.mxu0 0.0
        %746 = vmatpush1.xpose.msra.mxu0 %v654
        %747 = vmatprep.subr.mxu0 0.0
        %748 = vmatpush1.xpose.msra.mxu0 %v657
        %749 = vmatprep.subr.mxu0 0.0
        %750 = vmatpush1.xpose.msra.mxu0 %v660
        %751 = vmatprep.subr.mxu0 0.0
        %752 = vmatpush1.xpose.msra.mxu0 %v663
        %753 = vmatprep.subr.mxu0 0.0
        %754 = vmatpush1.xpose.msra.mxu0 %v666
        %755 = vmatprep.subr.mxu0 0.0
        %756 = vmatpush1.xpose.msra.mxu0 %v669
        %757 = vmatprep.subr.mxu0 0.0
        %758 = vmatpush1.xpose.msra.mxu0 %v672
        %759 = vmatprep.subr.mxu0 0.0
        %760 = vmatpush1.xpose.msra.mxu0 %v675
        %761 = vmatprep.subr.mxu0 0.0
        %762 = vmatpush1.xpose.msra.mxu0 %v678
        %763 = vmatprep.subr.mxu0 0.0
        %764 = vmatpush1.xpose.msra.mxu0 %v681
        %765 = vmatprep.subr.mxu0 0.0
        %766 = vmatpush1.xpose.msra.mxu0 %v684
        %767 = vmatprep.subr.mxu0 0.0
        %768 = vmatpush1.xpose.msra.mxu0 %v687
        %769 = vmatprep.subr.mxu0 0.0
        %770 = vmatpush1.xpose.msra.mxu0 %v690
        %771 = vmatprep.subr.mxu0 0.0
        %772 = vmatpush1.xpose.msra.mxu0 %v693
        %773 = vmatprep.subr.mxu0 0.0
        %774 = vmatpush1.xpose.msra.mxu0 %v696
        %775 = vmatprep.subr.mxu0 0.0
        %776 = vmatpush1.xpose.msra.mxu0 %v699
        %777 = vmatprep.subr.mxu0 0.0
        %778 = vmatpush1.xpose.msra.mxu0 %v702
        %779 = vmatprep.subr.mxu0 0.0
        %780 = vmatpush1.xpose.msra.mxu0 %v705
        %781 = vmatprep.subr.mxu0 0.0
        %782 = vmatpush1.xpose.msra.mxu0 %v708
        %783 = vmatprep.subr.mxu0 0.0
        %784 = vmatpush1.xpose.msra.mxu0 %v711
        %785 = vmatprep.subr.mxu0 0.0
        %786 = vmatpush1.xpose.msra.mxu0 %v714
        %787 = vmatprep.subr.mxu0 0.0
        %788 = vmatpush1.xpose.msra.mxu0 %v717
        %789 = vmatprep.subr.mxu0 0.0
        %790 = vmatpush1.xpose.msra.mxu0 %v720
        %791 = vmatprep.subr.mxu0 0.0
        %792 = vmatpush1.xpose.msra.mxu0 %v723
        %793 = vmatprep.subr.mxu0 0.0
        %794 = vmatpush1.xpose.msra.mxu0 %v726
        %795 = vmatprep.subr.mxu0 0.0
        %796 = vmatpush1.xpose.msra.mxu0 %v729
        %797 = vmatprep.subr.mxu0 0.0
        %798 = vmatpush1.xpose.msra.mxu0 %v732
        %799 = vmatprep.subr.mxu0 0.0
        %800 = vmatpush1.xpose.msra.mxu0 %v735
        %801 = vmatprep.mubr.f32.mxu0 0.0
        %802 = vmatmul.mubr.f32.gmra.mrb[0].mxu0 %v639
        %v803 = vpop.f32.mrb[0].mxu0
        %v804 = vadd.f32 0.0, %v803
        %v805 = vpop.f32.mrb[0].mxu0
        %v806 = vadd.f32 0.0, %v805
        %807 = vdwg.mxu0
        %v808 = vadd.f32 %v600, %v804
        %v809 = vadd.f32 %v602, %v806
        %s810 = scalar_lea.vmem %s195, 24
        %v811 = vld [vmem:[%s810] sm:$0xff]
        %v812 = vld [vmem:[%s810 + $0x8] sm:$0xff]
        %v813 = vld [vmem:[%s810 + $0x18] sm:$0xff]
        %v814 = vld [vmem:[%s810 + $0x20] sm:$0xff]
        %v815 = vld [vmem:[%s810 + $0x30] sm:$0xff]
        %v816 = vld [vmem:[%s810 + $0x38] sm:$0xff]
        %v817 = vld [vmem:[%s810 + $0x48] sm:$0xff]
        %v818 = vld [vmem:[%s810 + $0x50] sm:$0xff]
        %v819 = vld [vmem:[%s810 + $0x60] sm:$0xff]
        %v820 = vld [vmem:[%s810 + $0x68] sm:$0xff]
        %v821 = vld [vmem:[%s810 + $0x78] sm:$0xff]
        %v822 = vld [vmem:[%s810 + $0x80] sm:$0xff]
        %v823 = vld [vmem:[%s810 + $0x90] sm:$0xff]
        %v824 = vld [vmem:[%s810 + $0x98] sm:$0xff]
        %v825 = vld [vmem:[%s810 + $0xa8] sm:$0xff]
        %v826 = vld [vmem:[%s810 + $0xb0] sm:$0xff]
        %v827 = vld [vmem:[%s810 + $0xc0] sm:$0xff]
        %v828 = vld [vmem:[%s810 + $0xc8] sm:$0xff]
        %v829 = vld [vmem:[%s810 + $0xd8] sm:$0xff]
        %v830 = vld [vmem:[%s810 + $0xe0] sm:$0xff]
        %v831 = vld [vmem:[%s810 + $0xf0] sm:$0xff]
        %v832 = vld [vmem:[%s810 + $0xf8] sm:$0xff]
        %v833 = vld [vmem:[%s810 + $0x108] sm:$0xff]
        %v834 = vld [vmem:[%s810 + $0x110] sm:$0xff]
        %v835 = vld [vmem:[%s810 + $0x120] sm:$0xff]
        %v836 = vld [vmem:[%s810 + $0x128] sm:$0xff]
        %v837 = vld [vmem:[%s810 + $0x138] sm:$0xff]
        %v838 = vld [vmem:[%s810 + $0x140] sm:$0xff]
        %v839 = vld [vmem:[%s810 + $0x150] sm:$0xff]
        %v840 = vld [vmem:[%s810 + $0x158] sm:$0xff]
        %v841 = vld [vmem:[%s810 + $0x168] sm:$0xff]
        %v842 = vld [vmem:[%s810 + $0x170] sm:$0xff]
        %s843 = scalar_lea.vmem %s1, 24
        %v844 = vld [vmem:[%s843] sm:$0xff]
        %v846 = vsel %vm263, %v844, 0
        %v849 = vsel %vm263, %v811, 0
        %v852 = vsel %vm263, %v812, 0
        %v855 = vsel %vm263, %v813, 0
        %v858 = vsel %vm263, %v814, 0
        %v861 = vsel %vm263, %v815, 0
        %v864 = vsel %vm263, %v816, 0
        %v867 = vsel %vm263, %v817, 0
        %v870 = vsel %vm263, %v818, 0
        %v873 = vsel %vm263, %v819, 0
        %v876 = vsel %vm263, %v820, 0
        %v879 = vsel %vm263, %v821, 0
        %v882 = vsel %vm263, %v822, 0
        %v885 = vsel %vm263, %v823, 0
        %v888 = vsel %vm263, %v824, 0
        %v891 = vsel %vm263, %v825, 0
        %v894 = vsel %vm263, %v826, 0
        %v897 = vsel %vm263, %v827, 0
        %v900 = vsel %vm263, %v828, 0
        %v903 = vsel %vm263, %v829, 0
        %v906 = vsel %vm263, %v830, 0
        %v909 = vsel %vm263, %v831, 0
        %v912 = vsel %vm263, %v832, 0
        %v915 = vsel %vm263, %v833, 0
        %v918 = vsel %vm263, %v834, 0
        %v921 = vsel %vm263, %v835, 0
        %v924 = vsel %vm263, %v836, 0
        %v927 = vsel %vm263, %v837, 0
        %v930 = vsel %vm263, %v838, 0
        %v933 = vsel %vm263, %v839, 0
        %v936 = vsel %vm263, %v840, 0
        %v939 = vsel %vm263, %v841, 0
        %v942 = vsel %vm263, %v842, 0
        %944 = vmatprep.subr.mxu0 0.0
        %945 = vmatpush1.xpose.msra.mxu0 %v849
        %946 = vmatprep.subr.mxu0 0.0
        %947 = vmatpush1.xpose.msra.mxu0 %v852
        %948 = vmatprep.subr.mxu0 0.0
        %949 = vmatpush1.xpose.msra.mxu0 %v855
        %950 = vmatprep.subr.mxu0 0.0
        %951 = vmatpush1.xpose.msra.mxu0 %v858
        %952 = vmatprep.subr.mxu0 0.0
        %953 = vmatpush1.xpose.msra.mxu0 %v861
        %954 = vmatprep.subr.mxu0 0.0
        %955 = vmatpush1.xpose.msra.mxu0 %v864
        %956 = vmatprep.subr.mxu0 0.0
        %957 = vmatpush1.xpose.msra.mxu0 %v867
        %958 = vmatprep.subr.mxu0 0.0
        %959 = vmatpush1.xpose.msra.mxu0 %v870
        %960 = vmatprep.subr.mxu0 0.0
        %961 = vmatpush1.xpose.msra.mxu0 %v873
        %962 = vmatprep.subr.mxu0 0.0
        %963 = vmatpush1.xpose.msra.mxu0 %v876
        %964 = vmatprep.subr.mxu0 0.0
        %965 = vmatpush1.xpose.msra.mxu0 %v879
        %966 = vmatprep.subr.mxu0 0.0
        %967 = vmatpush1.xpose.msra.mxu0 %v882
        %968 = vmatprep.subr.mxu0 0.0
        %969 = vmatpush1.xpose.msra.mxu0 %v885
        %970 = vmatprep.subr.mxu0 0.0
        %971 = vmatpush1.xpose.msra.mxu0 %v888
        %972 = vmatprep.subr.mxu0 0.0
        %973 = vmatpush1.xpose.msra.mxu0 %v891
        %974 = vmatprep.subr.mxu0 0.0
        %975 = vmatpush1.xpose.msra.mxu0 %v894
        %976 = vmatprep.subr.mxu0 0.0
        %977 = vmatpush1.xpose.msra.mxu0 %v897
        %978 = vmatprep.subr.mxu0 0.0
        %979 = vmatpush1.xpose.msra.mxu0 %v900
        %980 = vmatprep.subr.mxu0 0.0
        %981 = vmatpush1.xpose.msra.mxu0 %v903
        %982 = vmatprep.subr.mxu0 0.0
        %983 = vmatpush1.xpose.msra.mxu0 %v906
        %984 = vmatprep.subr.mxu0 0.0
        %985 = vmatpush1.xpose.msra.mxu0 %v909
        %986 = vmatprep.subr.mxu0 0.0
        %987 = vmatpush1.xpose.msra.mxu0 %v912
        %988 = vmatprep.subr.mxu0 0.0
        %989 = vmatpush1.xpose.msra.mxu0 %v915
        %990 = vmatprep.subr.mxu0 0.0
        %991 = vmatpush1.xpose.msra.mxu0 %v918
        %992 = vmatprep.subr.mxu0 0.0
        %993 = vmatpush1.xpose.msra.mxu0 %v921
        %994 = vmatprep.subr.mxu0 0.0
        %995 = vmatpush1.xpose.msra.mxu0 %v924
        %996 = vmatprep.subr.mxu0 0.0
        %997 = vmatpush1.xpose.msra.mxu0 %v927
        %998 = vmatprep.subr.mxu0 0.0
        %999 = vmatpush1.xpose.msra.mxu0 %v930
        %1000 = vmatprep.subr.mxu0 0.0
        %1001 = vmatpush1.xpose.msra.mxu0 %v933
        %1002 = vmatprep.subr.mxu0 0.0
        %1003 = vmatpush1.xpose.msra.mxu0 %v936
        %1004 = vmatprep.subr.mxu0 0.0
        %1005 = vmatpush1.xpose.msra.mxu0 %v939
        %1006 = vmatprep.subr.mxu0 0.0
        %1007 = vmatpush1.xpose.msra.mxu0 %v942
        %1008 = vmatprep.mubr.f32.mxu0 0.0
        %1009 = vmatmul.mubr.f32.gmra.mrb[0].mxu0 %v846
        %v1010 = vpop.f32.mrb[0].mxu0
        %v1011 = vadd.f32 0.0, %v1010
        %v1012 = vpop.f32.mrb[0].mxu0
        %v1013 = vadd.f32 0.0, %v1012
        %1014 = vdwg.mxu0
        %v1015 = vadd.f32 %v808, %v1011
        %v1016 = vadd.f32 %v809, %v1013
        %v1017 = vld [vmem:[%s810 + $0x1] sm:$0xff]
        %v1018 = vld [vmem:[%s810 + $0x9] sm:$0xff]
        %v1019 = vld [vmem:[%s810 + $0x19] sm:$0xff]
        %v1020 = vld [vmem:[%s810 + $0x21] sm:$0xff]
        %v1021 = vld [vmem:[%s810 + $0x31] sm:$0xff]
        %v1022 = vld [vmem:[%s810 + $0x39] sm:$0xff]
        %v1023 = vld [vmem:[%s810 + $0x49] sm:$0xff]
        %v1024 = vld [vmem:[%s810 + $0x51] sm:$0xff]
        %v1025 = vld [vmem:[%s810 + $0x61] sm:$0xff]
        %v1026 = vld [vmem:[%s810 + $0x69] sm:$0xff]
        %v1027 = vld [vmem:[%s810 + $0x79] sm:$0xff]
        %v1028 = vld [vmem:[%s810 + $0x81] sm:$0xff]
        %v1029 = vld [vmem:[%s810 + $0x91] sm:$0xff]
        %v1030 = vld [vmem:[%s810 + $0x99] sm:$0xff]
        %v1031 = vld [vmem:[%s810 + $0xa9] sm:$0xff]
        %v1032 = vld [vmem:[%s810 + $0xb1] sm:$0xff]
        %v1033 = vld [vmem:[%s810 + $0xc1] sm:$0xff]
        %v1034 = vld [vmem:[%s810 + $0xc9] sm:$0xff]
        %v1035 = vld [vmem:[%s810 + $0xd9] sm:$0xff]
        %v1036 = vld [vmem:[%s810 + $0xe1] sm:$0xff]
        %v1037 = vld [vmem:[%s810 + $0xf1] sm:$0xff]
        %v1038 = vld [vmem:[%s810 + $0xf9] sm:$0xff]
        %v1039 = vld [vmem:[%s810 + $0x109] sm:$0xff]
        %v1040 = vld [vmem:[%s810 + $0x111] sm:$0xff]
        %v1041 = vld [vmem:[%s810 + $0x121] sm:$0xff]
        %v1042 = vld [vmem:[%s810 + $0x129] sm:$0xff]
        %v1043 = vld [vmem:[%s810 + $0x139] sm:$0xff]
        %v1044 = vld [vmem:[%s810 + $0x141] sm:$0xff]
        %v1045 = vld [vmem:[%s810 + $0x151] sm:$0xff]
        %v1046 = vld [vmem:[%s810 + $0x159] sm:$0xff]
        %v1047 = vld [vmem:[%s810 + $0x169] sm:$0xff]
        %v1048 = vld [vmem:[%s810 + $0x171] sm:$0xff]
        %s1049 = scalar_lea.vmem %s1, 32
        %v1050 = vld [vmem:[%s1049] sm:$0xff]
        %v1052 = vsel %vm263, %v1050, 0
        %v1055 = vsel %vm263, %v1017, 0
        %v1058 = vsel %vm263, %v1018, 0
        %v1061 = vsel %vm263, %v1019, 0
        %v1064 = vsel %vm263, %v1020, 0
        %v1067 = vsel %vm263, %v1021, 0
        %v1070 = vsel %vm263, %v1022, 0
        %v1073 = vsel %vm263, %v1023, 0
        %v1076 = vsel %vm263, %v1024, 0
        %v1079 = vsel %vm263, %v1025, 0
        %v1082 = vsel %vm263, %v1026, 0
        %v1085 = vsel %vm263, %v1027, 0
        %v1088 = vsel %vm263, %v1028, 0
        %v1091 = vsel %vm263, %v1029, 0
        %v1094 = vsel %vm263, %v1030, 0
        %v1097 = vsel %vm263, %v1031, 0
        %v1100 = vsel %vm263, %v1032, 0
        %v1103 = vsel %vm263, %v1033, 0
        %v1106 = vsel %vm263, %v1034, 0
        %v1109 = vsel %vm263, %v1035, 0
        %v1112 = vsel %vm263, %v1036, 0
        %v1115 = vsel %vm263, %v1037, 0
        %v1118 = vsel %vm263, %v1038, 0
        %v1121 = vsel %vm263, %v1039, 0
        %v1124 = vsel %vm263, %v1040, 0
        %v1127 = vsel %vm263, %v1041, 0
        %v1130 = vsel %vm263, %v1042, 0
        %v1133 = vsel %vm263, %v1043, 0
        %v1136 = vsel %vm263, %v1044, 0
        %v1139 = vsel %vm263, %v1045, 0
        %v1142 = vsel %vm263, %v1046, 0
        %v1145 = vsel %vm263, %v1047, 0
        %v1148 = vsel %vm263, %v1048, 0
        %1150 = vmatprep.subr.mxu0 0.0
        %1151 = vmatpush1.xpose.msra.mxu0 %v1055
        %1152 = vmatprep.subr.mxu0 0.0
        %1153 = vmatpush1.xpose.msra.mxu0 %v1058
        %1154 = vmatprep.subr.mxu0 0.0
        %1155 = vmatpush1.xpose.msra.mxu0 %v1061
        %1156 = vmatprep.subr.mxu0 0.0
        %1157 = vmatpush1.xpose.msra.mxu0 %v1064
        %1158 = vmatprep.subr.mxu0 0.0
        %1159 = vmatpush1.xpose.msra.mxu0 %v1067
        %1160 = vmatprep.subr.mxu0 0.0
        %1161 = vmatpush1.xpose.msra.mxu0 %v1070
        %1162 = vmatprep.subr.mxu0 0.0
        %1163 = vmatpush1.xpose.msra.mxu0 %v1073
        %1164 = vmatprep.subr.mxu0 0.0
        %1165 = vmatpush1.xpose.msra.mxu0 %v1076
        %1166 = vmatprep.subr.mxu0 0.0
        %1167 = vmatpush1.xpose.msra.mxu0 %v1079
        %1168 = vmatprep.subr.mxu0 0.0
        %1169 = vmatpush1.xpose.msra.mxu0 %v1082
        %1170 = vmatprep.subr.mxu0 0.0
        %1171 = vmatpush1.xpose.msra.mxu0 %v1085
        %1172 = vmatprep.subr.mxu0 0.0
        %1173 = vmatpush1.xpose.msra.mxu0 %v1088
        %1174 = vmatprep.subr.mxu0 0.0
        %1175 = vmatpush1.xpose.msra.mxu0 %v1091
        %1176 = vmatprep.subr.mxu0 0.0
        %1177 = vmatpush1.xpose.msra.mxu0 %v1094
        %1178 = vmatprep.subr.mxu0 0.0
        %1179 = vmatpush1.xpose.msra.mxu0 %v1097
        %1180 = vmatprep.subr.mxu0 0.0
        %1181 = vmatpush1.xpose.msra.mxu0 %v1100
        %1182 = vmatprep.subr.mxu0 0.0
        %1183 = vmatpush1.xpose.msra.mxu0 %v1103
        %1184 = vmatprep.subr.mxu0 0.0
        %1185 = vmatpush1.xpose.msra.mxu0 %v1106
        %1186 = vmatprep.subr.mxu0 0.0
        %1187 = vmatpush1.xpose.msra.mxu0 %v1109
        %1188 = vmatprep.subr.mxu0 0.0
        %1189 = vmatpush1.xpose.msra.mxu0 %v1112
        %1190 = vmatprep.subr.mxu0 0.0
        %1191 = vmatpush1.xpose.msra.mxu0 %v1115
        %1192 = vmatprep.subr.mxu0 0.0
        %1193 = vmatpush1.xpose.msra.mxu0 %v1118
        %1194 = vmatprep.subr.mxu0 0.0
        %1195 = vmatpush1.xpose.msra.mxu0 %v1121
        %1196 = vmatprep.subr.mxu0 0.0
        %1197 = vmatpush1.xpose.msra.mxu0 %v1124
        %1198 = vmatprep.subr.mxu0 0.0
        %1199 = vmatpush1.xpose.msra.mxu0 %v1127
        %1200 = vmatprep.subr.mxu0 0.0
        %1201 = vmatpush1.xpose.msra.mxu0 %v1130
        %1202 = vmatprep.subr.mxu0 0.0
        %1203 = vmatpush1.xpose.msra.mxu0 %v1133
        %1204 = vmatprep.subr.mxu0 0.0
        %1205 = vmatpush1.xpose.msra.mxu0 %v1136
        %1206 = vmatprep.subr.mxu0 0.0
        %1207 = vmatpush1.xpose.msra.mxu0 %v1139
        %1208 = vmatprep.subr.mxu0 0.0
        %1209 = vmatpush1.xpose.msra.mxu0 %v1142
        %1210 = vmatprep.subr.mxu0 0.0
        %1211 = vmatpush1.xpose.msra.mxu0 %v1145
        %1212 = vmatprep.subr.mxu0 0.0
        %1213 = vmatpush1.xpose.msra.mxu0 %v1148
        %1214 = vmatprep.mubr.f32.mxu0 0.0
        %1215 = vmatmul.mubr.f32.gmra.mrb[0].mxu0 %v1052
        %v1216 = vpop.f32.mrb[0].mxu0
        %v1217 = vadd.f32 0.0, %v1216
        %v1218 = vpop.f32.mrb[0].mxu0
        %v1219 = vadd.f32 0.0, %v1218
        %1220 = vdwg.mxu0
        %v1221 = vadd.f32 %v1015, %v1217
        %v1222 = vadd.f32 %v1016, %v1219
        %v1223 = vld [vmem:[%s810 + $0x2] sm:$0xff]
        %v1224 = vld [vmem:[%s810 + $0xa] sm:$0xff]
        %v1225 = vld [vmem:[%s810 + $0x1a] sm:$0xff]
        %v1226 = vld [vmem:[%s810 + $0x22] sm:$0xff]
        %v1227 = vld [vmem:[%s810 + $0x32] sm:$0xff]
        %v1228 = vld [vmem:[%s810 + $0x3a] sm:$0xff]
        %v1229 = vld [vmem:[%s810 + $0x4a] sm:$0xff]
        %v1230 = vld [vmem:[%s810 + $0x52] sm:$0xff]
        %v1231 = vld [vmem:[%s810 + $0x62] sm:$0xff]
        %v1232 = vld [vmem:[%s810 + $0x6a] sm:$0xff]
        %v1233 = vld [vmem:[%s810 + $0x7a] sm:$0xff]
        %v1234 = vld [vmem:[%s810 + $0x82] sm:$0xff]
        %v1235 = vld [vmem:[%s810 + $0x92] sm:$0xff]
        %v1236 = vld [vmem:[%s810 + $0x9a] sm:$0xff]
        %v1237 = vld [vmem:[%s810 + $0xaa] sm:$0xff]
        %v1238 = vld [vmem:[%s810 + $0xb2] sm:$0xff]
        %v1239 = vld [vmem:[%s810 + $0xc2] sm:$0xff]
        %v1240 = vld [vmem:[%s810 + $0xca] sm:$0xff]
        %v1241 = vld [vmem:[%s810 + $0xda] sm:$0xff]
        %v1242 = vld [vmem:[%s810 + $0xe2] sm:$0xff]
        %v1243 = vld [vmem:[%s810 + $0xf2] sm:$0xff]
        %v1244 = vld [vmem:[%s810 + $0xfa] sm:$0xff]
        %v1245 = vld [vmem:[%s810 + $0x10a] sm:$0xff]
        %v1246 = vld [vmem:[%s810 + $0x112] sm:$0xff]
        %v1247 = vld [vmem:[%s810 + $0x122] sm:$0xff]
        %v1248 = vld [vmem:[%s810 + $0x12a] sm:$0xff]
        %v1249 = vld [vmem:[%s810 + $0x13a] sm:$0xff]
        %v1250 = vld [vmem:[%s810 + $0x142] sm:$0xff]
        %v1251 = vld [vmem:[%s810 + $0x152] sm:$0xff]
        %v1252 = vld [vmem:[%s810 + $0x15a] sm:$0xff]
        %v1253 = vld [vmem:[%s810 + $0x16a] sm:$0xff]
        %v1254 = vld [vmem:[%s810 + $0x172] sm:$0xff]
        %s1255 = scalar_lea.vmem %s1, 40
        %v1256 = vld [vmem:[%s1255] sm:$0xff]
        %v1258 = vsel %vm263, %v1256, 0
        %v1261 = vsel %vm263, %v1223, 0
        %v1264 = vsel %vm263, %v1224, 0
        %v1267 = vsel %vm263, %v1225, 0
        %v1270 = vsel %vm263, %v1226, 0
        %v1273 = vsel %vm263, %v1227, 0
        %v1276 = vsel %vm263, %v1228, 0
        %v1279 = vsel %vm263, %v1229, 0
        %v1282 = vsel %vm263, %v1230, 0
        %v1285 = vsel %vm263, %v1231, 0
        %v1288 = vsel %vm263, %v1232, 0
        %v1291 = vsel %vm263, %v1233, 0
        %v1294 = vsel %vm263, %v1234, 0
        %v1297 = vsel %vm263, %v1235, 0
        %v1300 = vsel %vm263, %v1236, 0
        %v1303 = vsel %vm263, %v1237, 0
        %v1306 = vsel %vm263, %v1238, 0
        %v1309 = vsel %vm263, %v1239, 0
        %v1312 = vsel %vm263, %v1240, 0
        %v1315 = vsel %vm263, %v1241, 0
        %v1318 = vsel %vm263, %v1242, 0
        %v1321 = vsel %vm263, %v1243, 0
        %v1324 = vsel %vm263, %v1244, 0
        %v1327 = vsel %vm263, %v1245, 0
        %v1330 = vsel %vm263, %v1246, 0
        %v1333 = vsel %vm263, %v1247, 0
        %v1336 = vsel %vm263, %v1248, 0
        %v1339 = vsel %vm263, %v1249, 0
        %v1342 = vsel %vm263, %v1250, 0
        %v1345 = vsel %vm263, %v1251, 0
        %v1348 = vsel %vm263, %v1252, 0
        %v1351 = vsel %vm263, %v1253, 0
        %v1354 = vsel %vm263, %v1254, 0
        %1356 = vmatprep.subr.mxu0 0.0
        %1357 = vmatpush1.xpose.msra.mxu0 %v1261
        %1358 = vmatprep.subr.mxu0 0.0
        %1359 = vmatpush1.xpose.msra.mxu0 %v1264
        %1360 = vmatprep.subr.mxu0 0.0
        %1361 = vmatpush1.xpose.msra.mxu0 %v1267
        %1362 = vmatprep.subr.mxu0 0.0
        %1363 = vmatpush1.xpose.msra.mxu0 %v1270
        %1364 = vmatprep.subr.mxu0 0.0
        %1365 = vmatpush1.xpose.msra.mxu0 %v1273
        %1366 = vmatprep.subr.mxu0 0.0
        %1367 = vmatpush1.xpose.msra.mxu0 %v1276
        %1368 = vmatprep.subr.mxu0 0.0
        %1369 = vmatpush1.xpose.msra.mxu0 %v1279
        %1370 = vmatprep.subr.mxu0 0.0
        %1371 = vmatpush1.xpose.msra.mxu0 %v1282
        %1372 = vmatprep.subr.mxu0 0.0
        %1373 = vmatpush1.xpose.msra.mxu0 %v1285
        %1374 = vmatprep.subr.mxu0 0.0
        %1375 = vmatpush1.xpose.msra.mxu0 %v1288
        %1376 = vmatprep.subr.mxu0 0.0
        %1377 = vmatpush1.xpose.msra.mxu0 %v1291
        %1378 = vmatprep.subr.mxu0 0.0
        %1379 = vmatpush1.xpose.msra.mxu0 %v1294
        %1380 = vmatprep.subr.mxu0 0.0
        %1381 = vmatpush1.xpose.msra.mxu0 %v1297
        %1382 = vmatprep.subr.mxu0 0.0
        %1383 = vmatpush1.xpose.msra.mxu0 %v1300
        %1384 = vmatprep.subr.mxu0 0.0
        %1385 = vmatpush1.xpose.msra.mxu0 %v1303
        %1386 = vmatprep.subr.mxu0 0.0
        %1387 = vmatpush1.xpose.msra.mxu0 %v1306
        %1388 = vmatprep.subr.mxu0 0.0
        %1389 = vmatpush1.xpose.msra.mxu0 %v1309
        %1390 = vmatprep.subr.mxu0 0.0
        %1391 = vmatpush1.xpose.msra.mxu0 %v1312
        %1392 = vmatprep.subr.mxu0 0.0
        %1393 = vmatpush1.xpose.msra.mxu0 %v1315
        %1394 = vmatprep.subr.mxu0 0.0
        %1395 = vmatpush1.xpose.msra.mxu0 %v1318
        %1396 = vmatprep.subr.mxu0 0.0
        %1397 = vmatpush1.xpose.msra.mxu0 %v1321
        %1398 = vmatprep.subr.mxu0 0.0
        %1399 = vmatpush1.xpose.msra.mxu0 %v1324
        %1400 = vmatprep.subr.mxu0 0.0
        %1401 = vmatpush1.xpose.msra.mxu0 %v1327
        %1402 = vmatprep.subr.mxu0 0.0
        %1403 = vmatpush1.xpose.msra.mxu0 %v1330
        %1404 = vmatprep.subr.mxu0 0.0
        %1405 = vmatpush1.xpose.msra.mxu0 %v1333
        %1406 = vmatprep.subr.mxu0 0.0
        %1407 = vmatpush1.xpose.msra.mxu0 %v1336
        %1408 = vmatprep.subr.mxu0 0.0
        %1409 = vmatpush1.xpose.msra.mxu0 %v1339
        %1410 = vmatprep.subr.mxu0 0.0
        %1411 = vmatpush1.xpose.msra.mxu0 %v1342
        %1412 = vmatprep.subr.mxu0 0.0
        %1413 = vmatpush1.xpose.msra.mxu0 %v1345
        %1414 = vmatprep.subr.mxu0 0.0
        %1415 = vmatpush1.xpose.msra.mxu0 %v1348
        %1416 = vmatprep.subr.mxu0 0.0
        %1417 = vmatpush1.xpose.msra.mxu0 %v1351
        %1418 = vmatprep.subr.mxu0 0.0
        %1419 = vmatpush1.xpose.msra.mxu0 %v1354
        %1420 = vmatprep.mubr.f32.mxu0 0.0
        %1421 = vmatmul.mubr.f32.gmra.mrb[0].mxu0 %v1258
        %v1422 = vpop.f32.mrb[0].mxu0
        %v1423 = vadd.f32 0.0, %v1422
        %v1424 = vpop.f32.mrb[0].mxu0
        %v1425 = vadd.f32 0.0, %v1424
        %1426 = vdwg.mxu0
        %v1427 = vadd.f32 %v1221, %v1423
        %v1428 = vadd.f32 %v1222, %v1425
        %s1429 = scalar_lea.vmem %s195, 48
        %v1430 = vld [vmem:[%s1429] sm:$0xff]
        %v1431 = vld [vmem:[%s1429 + $0x8] sm:$0xff]
        %v1432 = vld [vmem:[%s1429 + $0x18] sm:$0xff]
        %v1433 = vld [vmem:[%s1429 + $0x20] sm:$0xff]
        %v1434 = vld [vmem:[%s1429 + $0x30] sm:$0xff]
        %v1435 = vld [vmem:[%s1429 + $0x38] sm:$0xff]
        %v1436 = vld [vmem:[%s1429 + $0x48] sm:$0xff]
        %v1437 = vld [vmem:[%s1429 + $0x50] sm:$0xff]
        %v1438 = vld [vmem:[%s1429 + $0x60] sm:$0xff]
        %v1439 = vld [vmem:[%s1429 + $0x68] sm:$0xff]
        %v1440 = vld [vmem:[%s1429 + $0x78] sm:$0xff]
        %v1441 = vld [vmem:[%s1429 + $0x80] sm:$0xff]
        %v1442 = vld [vmem:[%s1429 + $0x90] sm:$0xff]
        %v1443 = vld [vmem:[%s1429 + $0x98] sm:$0xff]
        %v1444 = vld [vmem:[%s1429 + $0xa8] sm:$0xff]
        %v1445 = vld [vmem:[%s1429 + $0xb0] sm:$0xff]
        %v1446 = vld [vmem:[%s1429 + $0xc0] sm:$0xff]
        %v1447 = vld [vmem:[%s1429 + $0xc8] sm:$0xff]
        %v1448 = vld [vmem:[%s1429 + $0xd8] sm:$0xff]
        %v1449 = vld [vmem:[%s1429 + $0xe0] sm:$0xff]
        %v1450 = vld [vmem:[%s1429 + $0xf0] sm:$0xff]
        %v1451 = vld [vmem:[%s1429 + $0xf8] sm:$0xff]
        %v1452 = vld [vmem:[%s1429 + $0x108] sm:$0xff]
        %v1453 = vld [vmem:[%s1429 + $0x110] sm:$0xff]
        %v1454 = vld [vmem:[%s1429 + $0x120] sm:$0xff]
        %v1455 = vld [vmem:[%s1429 + $0x128] sm:$0xff]
        %v1456 = vld [vmem:[%s1429 + $0x138] sm:$0xff]
        %v1457 = vld [vmem:[%s1429 + $0x140] sm:$0xff]
        %v1458 = vld [vmem:[%s1429 + $0x150] sm:$0xff]
        %v1459 = vld [vmem:[%s1429 + $0x158] sm:$0xff]
        %v1460 = vld [vmem:[%s1429 + $0x168] sm:$0xff]
        %v1461 = vld [vmem:[%s1429 + $0x170] sm:$0xff]
        %s1462 = scalar_lea.vmem %s1, 48
        %v1463 = vld [vmem:[%s1462] sm:$0xff]
        %v1465 = vsel %vm263, %v1463, 0
        %v1468 = vsel %vm263, %v1430, 0
        %v1471 = vsel %vm263, %v1431, 0
        %v1474 = vsel %vm263, %v1432, 0
        %v1477 = vsel %vm263, %v1433, 0
        %v1480 = vsel %vm263, %v1434, 0
        %v1483 = vsel %vm263, %v1435, 0
        %v1486 = vsel %vm263, %v1436, 0
        %v1489 = vsel %vm263, %v1437, 0
        %v1492 = vsel %vm263, %v1438, 0
        %v1495 = vsel %vm263, %v1439, 0
        %v1498 = vsel %vm263, %v1440, 0
        %v1501 = vsel %vm263, %v1441, 0
        %v1504 = vsel %vm263, %v1442, 0
        %v1507 = vsel %vm263, %v1443, 0
        %v1510 = vsel %vm263, %v1444, 0
        %v1513 = vsel %vm263, %v1445, 0
        %v1516 = vsel %vm263, %v1446, 0
        %v1519 = vsel %vm263, %v1447, 0
        %v1522 = vsel %vm263, %v1448, 0
        %v1525 = vsel %vm263, %v1449, 0
        %v1528 = vsel %vm263, %v1450, 0
        %v1531 = vsel %vm263, %v1451, 0
        %v1534 = vsel %vm263, %v1452, 0
        %v1537 = vsel %vm263, %v1453, 0
        %v1540 = vsel %vm263, %v1454, 0
        %v1543 = vsel %vm263, %v1455, 0
        %v1546 = vsel %vm263, %v1456, 0
        %v1549 = vsel %vm263, %v1457, 0
        %v1552 = vsel %vm263, %v1458, 0
        %v1555 = vsel %vm263, %v1459, 0
        %v1558 = vsel %vm263, %v1460, 0
        %v1561 = vsel %vm263, %v1461, 0
        %1563 = vmatprep.subr.mxu0 0.0
        %1564 = vmatpush1.xpose.msra.mxu0 %v1468
        %1565 = vmatprep.subr.mxu0 0.0
        %1566 = vmatpush1.xpose.msra.mxu0 %v1471
        %1567 = vmatprep.subr.mxu0 0.0
        %1568 = vmatpush1.xpose.msra.mxu0 %v1474
        %1569 = vmatprep.subr.mxu0 0.0
        %1570 = vmatpush1.xpose.msra.mxu0 %v1477
        %1571 = vmatprep.subr.mxu0 0.0
        %1572 = vmatpush1.xpose.msra.mxu0 %v1480
        %1573 = vmatprep.subr.mxu0 0.0
        %1574 = vmatpush1.xpose.msra.mxu0 %v1483
        %1575 = vmatprep.subr.mxu0 0.0
        %1576 = vmatpush1.xpose.msra.mxu0 %v1486
        %1577 = vmatprep.subr.mxu0 0.0
        %1578 = vmatpush1.xpose.msra.mxu0 %v1489
        %1579 = vmatprep.subr.mxu0 0.0
        %1580 = vmatpush1.xpose.msra.mxu0 %v1492
        %1581 = vmatprep.subr.mxu0 0.0
        %1582 = vmatpush1.xpose.msra.mxu0 %v1495
        %1583 = vmatprep.subr.mxu0 0.0
        %1584 = vmatpush1.xpose.msra.mxu0 %v1498
        %1585 = vmatprep.subr.mxu0 0.0
        %1586 = vmatpush1.xpose.msra.mxu0 %v1501
        %1587 = vmatprep.subr.mxu0 0.0
        %1588 = vmatpush1.xpose.msra.mxu0 %v1504
        %1589 = vmatprep.subr.mxu0 0.0
        %1590 = vmatpush1.xpose.msra.mxu0 %v1507
        %1591 = vmatprep.subr.mxu0 0.0
        %1592 = vmatpush1.xpose.msra.mxu0 %v1510
        %1593 = vmatprep.subr.mxu0 0.0
        %1594 = vmatpush1.xpose.msra.mxu0 %v1513
        %1595 = vmatprep.subr.mxu0 0.0
        %1596 = vmatpush1.xpose.msra.mxu0 %v1516
        %1597 = vmatprep.subr.mxu0 0.0
        %1598 = vmatpush1.xpose.msra.mxu0 %v1519
        %1599 = vmatprep.subr.mxu0 0.0
        %1600 = vmatpush1.xpose.msra.mxu0 %v1522
        %1601 = vmatprep.subr.mxu0 0.0
        %1602 = vmatpush1.xpose.msra.mxu0 %v1525
        %1603 = vmatprep.subr.mxu0 0.0
        %1604 = vmatpush1.xpose.msra.mxu0 %v1528
        %1605 = vmatprep.subr.mxu0 0.0
        %1606 = vmatpush1.xpose.msra.mxu0 %v1531
        %1607 = vmatprep.subr.mxu0 0.0
        %1608 = vmatpush1.xpose.msra.mxu0 %v1534
        %1609 = vmatprep.subr.mxu0 0.0
        %1610 = vmatpush1.xpose.msra.mxu0 %v1537
        %1611 = vmatprep.subr.mxu0 0.0
        %1612 = vmatpush1.xpose.msra.mxu0 %v1540
        %1613 = vmatprep.subr.mxu0 0.0
        %1614 = vmatpush1.xpose.msra.mxu0 %v1543
        %1615 = vmatprep.subr.mxu0 0.0
        %1616 = vmatpush1.xpose.msra.mxu0 %v1546
        %1617 = vmatprep.subr.mxu0 0.0
        %1618 = vmatpush1.xpose.msra.mxu0 %v1549
        %1619 = vmatprep.subr.mxu0 0.0
        %1620 = vmatpush1.xpose.msra.mxu0 %v1552
        %1621 = vmatprep.subr.mxu0 0.0
        %1622 = vmatpush1.xpose.msra.mxu0 %v1555
        %1623 = vmatprep.subr.mxu0 0.0
        %1624 = vmatpush1.xpose.msra.mxu0 %v1558
        %1625 = vmatprep.subr.mxu0 0.0
        %1626 = vmatpush1.xpose.msra.mxu0 %v1561
        %1627 = vmatprep.mubr.f32.mxu0 0.0
        %1628 = vmatmul.mubr.f32.gmra.mrb[0].mxu0 %v1465
        %v1629 = vpop.f32.mrb[0].mxu0
        %v1630 = vadd.f32 0.0, %v1629
        %v1631 = vpop.f32.mrb[0].mxu0
        %v1632 = vadd.f32 0.0, %v1631
        %1633 = vdwg.mxu0
        %v1634 = vadd.f32 %v1427, %v1630
        %v1635 = vadd.f32 %v1428, %v1632
        %v1636 = vld [vmem:[%s1429 + $0x1] sm:$0xff]
        %v1637 = vld [vmem:[%s1429 + $0x9] sm:$0xff]
        %v1638 = vld [vmem:[%s1429 + $0x19] sm:$0xff]
        %v1639 = vld [vmem:[%s1429 + $0x21] sm:$0xff]
        %v1640 = vld [vmem:[%s1429 + $0x31] sm:$0xff]
        %v1641 = vld [vmem:[%s1429 + $0x39] sm:$0xff]
        %v1642 = vld [vmem:[%s1429 + $0x49] sm:$0xff]
        %v1643 = vld [vmem:[%s1429 + $0x51] sm:$0xff]
        %v1644 = vld [vmem:[%s1429 + $0x61] sm:$0xff]
        %v1645 = vld [vmem:[%s1429 + $0x69] sm:$0xff]
        %v1646 = vld [vmem:[%s1429 + $0x79] sm:$0xff]
        %v1647 = vld [vmem:[%s1429 + $0x81] sm:$0xff]
        %v1648 = vld [vmem:[%s1429 + $0x91] sm:$0xff]
        %v1649 = vld [vmem:[%s1429 + $0x99] sm:$0xff]
        %v1650 = vld [vmem:[%s1429 + $0xa9] sm:$0xff]
        %v1651 = vld [vmem:[%s1429 + $0xb1] sm:$0xff]
        %v1652 = vld [vmem:[%s1429 + $0xc1] sm:$0xff]
        %v1653 = vld [vmem:[%s1429 + $0xc9] sm:$0xff]
        %v1654 = vld [vmem:[%s1429 + $0xd9] sm:$0xff]
        %v1655 = vld [vmem:[%s1429 + $0xe1] sm:$0xff]
        %v1656 = vld [vmem:[%s1429 + $0xf1] sm:$0xff]
        %v1657 = vld [vmem:[%s1429 + $0xf9] sm:$0xff]
        %v1658 = vld [vmem:[%s1429 + $0x109] sm:$0xff]
        %v1659 = vld [vmem:[%s1429 + $0x111] sm:$0xff]
        %v1660 = vld [vmem:[%s1429 + $0x121] sm:$0xff]
        %v1661 = vld [vmem:[%s1429 + $0x129] sm:$0xff]
        %v1662 = vld [vmem:[%s1429 + $0x139] sm:$0xff]
        %v1663 = vld [vmem:[%s1429 + $0x141] sm:$0xff]
        %v1664 = vld [vmem:[%s1429 + $0x151] sm:$0xff]
        %v1665 = vld [vmem:[%s1429 + $0x159] sm:$0xff]
        %v1666 = vld [vmem:[%s1429 + $0x169] sm:$0xff]
        %v1667 = vld [vmem:[%s1429 + $0x171] sm:$0xff]
        %s1668 = scalar_lea.vmem %s1, 56
        %v1669 = vld [vmem:[%s1668] sm:$0xff]
        %v1671 = vsel %vm263, %v1669, 0
        %v1674 = vsel %vm263, %v1636, 0
        %v1677 = vsel %vm263, %v1637, 0
        %v1680 = vsel %vm263, %v1638, 0
        %v1683 = vsel %vm263, %v1639, 0
        %v1686 = vsel %vm263, %v1640, 0
        %v1689 = vsel %vm263, %v1641, 0
        %v1692 = vsel %vm263, %v1642, 0
        %v1695 = vsel %vm263, %v1643, 0
        %v1698 = vsel %vm263, %v1644, 0
        %v1701 = vsel %vm263, %v1645, 0
        %v1704 = vsel %vm263, %v1646, 0
        %v1707 = vsel %vm263, %v1647, 0
        %v1710 = vsel %vm263, %v1648, 0
        %v1713 = vsel %vm263, %v1649, 0
        %v1716 = vsel %vm263, %v1650, 0
        %v1719 = vsel %vm263, %v1651, 0
        %v1722 = vsel %vm263, %v1652, 0
        %v1725 = vsel %vm263, %v1653, 0
        %v1728 = vsel %vm263, %v1654, 0
        %v1731 = vsel %vm263, %v1655, 0
        %v1734 = vsel %vm263, %v1656, 0
        %v1737 = vsel %vm263, %v1657, 0
        %v1740 = vsel %vm263, %v1658, 0
        %v1743 = vsel %vm263, %v1659, 0
        %v1746 = vsel %vm263, %v1660, 0
        %v1749 = vsel %vm263, %v1661, 0
        %v1752 = vsel %vm263, %v1662, 0
        %v1755 = vsel %vm263, %v1663, 0
        %v1758 = vsel %vm263, %v1664, 0
        %v1761 = vsel %vm263, %v1665, 0
        %v1764 = vsel %vm263, %v1666, 0
        %v1767 = vsel %vm263, %v1667, 0
        %1769 = vmatprep.subr.mxu0 0.0
        %1770 = vmatpush1.xpose.msra.mxu0 %v1674
        %1771 = vmatprep.subr.mxu0 0.0
        %1772 = vmatpush1.xpose.msra.mxu0 %v1677
        %1773 = vmatprep.subr.mxu0 0.0
        %1774 = vmatpush1.xpose.msra.mxu0 %v1680
        %1775 = vmatprep.subr.mxu0 0.0
        %1776 = vmatpush1.xpose.msra.mxu0 %v1683
        %1777 = vmatprep.subr.mxu0 0.0
        %1778 = vmatpush1.xpose.msra.mxu0 %v1686
        %1779 = vmatprep.subr.mxu0 0.0
        %1780 = vmatpush1.xpose.msra.mxu0 %v1689
        %1781 = vmatprep.subr.mxu0 0.0
        %1782 = vmatpush1.xpose.msra.mxu0 %v1692
        %1783 = vmatprep.subr.mxu0 0.0
        %1784 = vmatpush1.xpose.msra.mxu0 %v1695
        %1785 = vmatprep.subr.mxu0 0.0
        %1786 = vmatpush1.xpose.msra.mxu0 %v1698
        %1787 = vmatprep.subr.mxu0 0.0
        %1788 = vmatpush1.xpose.msra.mxu0 %v1701
        %1789 = vmatprep.subr.mxu0 0.0
        %1790 = vmatpush1.xpose.msra.mxu0 %v1704
        %1791 = vmatprep.subr.mxu0 0.0
        %1792 = vmatpush1.xpose.msra.mxu0 %v1707
        %1793 = vmatprep.subr.mxu0 0.0
        %1794 = vmatpush1.xpose.msra.mxu0 %v1710
        %1795 = vmatprep.subr.mxu0 0.0
        %1796 = vmatpush1.xpose.msra.mxu0 %v1713
        %1797 = vmatprep.subr.mxu0 0.0
        %1798 = vmatpush1.xpose.msra.mxu0 %v1716
        %1799 = vmatprep.subr.mxu0 0.0
        %1800 = vmatpush1.xpose.msra.mxu0 %v1719
        %1801 = vmatprep.subr.mxu0 0.0
        %1802 = vmatpush1.xpose.msra.mxu0 %v1722
        %1803 = vmatprep.subr.mxu0 0.0
        %1804 = vmatpush1.xpose.msra.mxu0 %v1725
        %1805 = vmatprep.subr.mxu0 0.0
        %1806 = vmatpush1.xpose.msra.mxu0 %v1728
        %1807 = vmatprep.subr.mxu0 0.0
        %1808 = vmatpush1.xpose.msra.mxu0 %v1731
        %1809 = vmatprep.subr.mxu0 0.0
        %1810 = vmatpush1.xpose.msra.mxu0 %v1734
        %1811 = vmatprep.subr.mxu0 0.0
        %1812 = vmatpush1.xpose.msra.mxu0 %v1737
        %1813 = vmatprep.subr.mxu0 0.0
        %1814 = vmatpush1.xpose.msra.mxu0 %v1740
        %1815 = vmatprep.subr.mxu0 0.0
        %1816 = vmatpush1.xpose.msra.mxu0 %v1743
        %1817 = vmatprep.subr.mxu0 0.0
        %1818 = vmatpush1.xpose.msra.mxu0 %v1746
        %1819 = vmatprep.subr.mxu0 0.0
        %1820 = vmatpush1.xpose.msra.mxu0 %v1749
        %1821 = vmatprep.subr.mxu0 0.0
        %1822 = vmatpush1.xpose.msra.mxu0 %v1752
        %1823 = vmatprep.subr.mxu0 0.0
        %1824 = vmatpush1.xpose.msra.mxu0 %v1755
        %1825 = vmatprep.subr.mxu0 0.0
        %1826 = vmatpush1.xpose.msra.mxu0 %v1758
        %1827 = vmatprep.subr.mxu0 0.0
        %1828 = vmatpush1.xpose.msra.mxu0 %v1761
        %1829 = vmatprep.subr.mxu0 0.0
        %1830 = vmatpush1.xpose.msra.mxu0 %v1764
        %1831 = vmatprep.subr.mxu0 0.0
        %1832 = vmatpush1.xpose.msra.mxu0 %v1767
        %1833 = vmatprep.mubr.f32.mxu0 0.0
        %1834 = vmatmul.mubr.f32.gmra.mrb[0].mxu0 %v1671
        %v1835 = vpop.f32.mrb[0].mxu0
        %v1836 = vadd.f32 0.0, %v1835
        %v1837 = vpop.f32.mrb[0].mxu0
        %v1838 = vadd.f32 0.0, %v1837
        %1839 = vdwg.mxu0
        %v1840 = vadd.f32 %v1634, %v1836
        %v1841 = vadd.f32 %v1635, %v1838
        %v1842 = vld [vmem:[%s1429 + $0x2] sm:$0xff]
        %v1843 = vld [vmem:[%s1429 + $0xa] sm:$0xff]
        %v1844 = vld [vmem:[%s1429 + $0x1a] sm:$0xff]
        %v1845 = vld [vmem:[%s1429 + $0x22] sm:$0xff]
        %v1846 = vld [vmem:[%s1429 + $0x32] sm:$0xff]
        %v1847 = vld [vmem:[%s1429 + $0x3a] sm:$0xff]
        %v1848 = vld [vmem:[%s1429 + $0x4a] sm:$0xff]
        %v1849 = vld [vmem:[%s1429 + $0x52] sm:$0xff]
        %v1850 = vld [vmem:[%s1429 + $0x62] sm:$0xff]
        %v1851 = vld [vmem:[%s1429 + $0x6a] sm:$0xff]
        %v1852 = vld [vmem:[%s1429 + $0x7a] sm:$0xff]
        %v1853 = vld [vmem:[%s1429 + $0x82] sm:$0xff]
        %v1854 = vld [vmem:[%s1429 + $0x92] sm:$0xff]
        %v1855 = vld [vmem:[%s1429 + $0x9a] sm:$0xff]
        %v1856 = vld [vmem:[%s1429 + $0xaa] sm:$0xff]
        %v1857 = vld [vmem:[%s1429 + $0xb2] sm:$0xff]
        %v1858 = vld [vmem:[%s1429 + $0xc2] sm:$0xff]
        %v1859 = vld [vmem:[%s1429 + $0xca] sm:$0xff]
        %v1860 = vld [vmem:[%s1429 + $0xda] sm:$0xff]
        %v1861 = vld [vmem:[%s1429 + $0xe2] sm:$0xff]
        %v1862 = vld [vmem:[%s1429 + $0xf2] sm:$0xff]
        %v1863 = vld [vmem:[%s1429 + $0xfa] sm:$0xff]
        %v1864 = vld [vmem:[%s1429 + $0x10a] sm:$0xff]
        %v1865 = vld [vmem:[%s1429 + $0x112] sm:$0xff]
        %v1866 = vld [vmem:[%s1429 + $0x122] sm:$0xff]
        %v1867 = vld [vmem:[%s1429 + $0x12a] sm:$0xff]
        %v1868 = vld [vmem:[%s1429 + $0x13a] sm:$0xff]
        %v1869 = vld [vmem:[%s1429 + $0x142] sm:$0xff]
        %v1870 = vld [vmem:[%s1429 + $0x152] sm:$0xff]
        %v1871 = vld [vmem:[%s1429 + $0x15a] sm:$0xff]
        %v1872 = vld [vmem:[%s1429 + $0x16a] sm:$0xff]
        %v1873 = vld [vmem:[%s1429 + $0x172] sm:$0xff]
        %s1874 = scalar_lea.vmem %s1, 64
        %v1875 = vld [vmem:[%s1874] sm:$0xff]
        %v1877 = vsel %vm263, %v1875, 0
        %v1880 = vsel %vm263, %v1842, 0
        %v1883 = vsel %vm263, %v1843, 0
        %v1886 = vsel %vm263, %v1844, 0
        %v1889 = vsel %vm263, %v1845, 0
        %v1892 = vsel %vm263, %v1846, 0
        %v1895 = vsel %vm263, %v1847, 0
        %v1898 = vsel %vm263, %v1848, 0
        %v1901 = vsel %vm263, %v1849, 0
        %v1904 = vsel %vm263, %v1850, 0
        %v1907 = vsel %vm263, %v1851, 0
        %v1910 = vsel %vm263, %v1852, 0
        %v1913 = vsel %vm263, %v1853, 0
        %v1916 = vsel %vm263, %v1854, 0
        %v1919 = vsel %vm263, %v1855, 0
        %v1922 = vsel %vm263, %v1856, 0
        %v1925 = vsel %vm263, %v1857, 0
        %v1928 = vsel %vm263, %v1858, 0
        %v1931 = vsel %vm263, %v1859, 0
        %v1934 = vsel %vm263, %v1860, 0
        %v1937 = vsel %vm263, %v1861, 0
        %v1940 = vsel %vm263, %v1862, 0
        %v1943 = vsel %vm263, %v1863, 0
        %v1946 = vsel %vm263, %v1864, 0
        %v1949 = vsel %vm263, %v1865, 0
        %v1952 = vsel %vm263, %v1866, 0
        %v1955 = vsel %vm263, %v1867, 0
        %v1958 = vsel %vm263, %v1868, 0
        %v1961 = vsel %vm263, %v1869, 0
        %v1964 = vsel %vm263, %v1870, 0
        %v1967 = vsel %vm263, %v1871, 0
        %v1970 = vsel %vm263, %v1872, 0
        %v1973 = vsel %vm263, %v1873, 0
        %1975 = vmatprep.subr.mxu0 0.0
        %1976 = vmatpush1.xpose.msra.mxu0 %v1880
        %1977 = vmatprep.subr.mxu0 0.0
        %1978 = vmatpush1.xpose.msra.mxu0 %v1883
        %1979 = vmatprep.subr.mxu0 0.0
        %1980 = vmatpush1.xpose.msra.mxu0 %v1886
        %1981 = vmatprep.subr.mxu0 0.0
        %1982 = vmatpush1.xpose.msra.mxu0 %v1889
        %1983 = vmatprep.subr.mxu0 0.0
        %1984 = vmatpush1.xpose.msra.mxu0 %v1892
        %1985 = vmatprep.subr.mxu0 0.0
        %1986 = vmatpush1.xpose.msra.mxu0 %v1895
        %1987 = vmatprep.subr.mxu0 0.0
        %1988 = vmatpush1.xpose.msra.mxu0 %v1898
        %1989 = vmatprep.subr.mxu0 0.0
        %1990 = vmatpush1.xpose.msra.mxu0 %v1901
        %1991 = vmatprep.subr.mxu0 0.0
        %1992 = vmatpush1.xpose.msra.mxu0 %v1904
        %1993 = vmatprep.subr.mxu0 0.0
        %1994 = vmatpush1.xpose.msra.mxu0 %v1907
        %1995 = vmatprep.subr.mxu0 0.0
        %1996 = vmatpush1.xpose.msra.mxu0 %v1910
        %1997 = vmatprep.subr.mxu0 0.0
        %1998 = vmatpush1.xpose.msra.mxu0 %v1913
        %1999 = vmatprep.subr.mxu0 0.0
        %2000 = vmatpush1.xpose.msra.mxu0 %v1916
        %2001 = vmatprep.subr.mxu0 0.0
        %2002 = vmatpush1.xpose.msra.mxu0 %v1919
        %2003 = vmatprep.subr.mxu0 0.0
        %2004 = vmatpush1.xpose.msra.mxu0 %v1922
        %2005 = vmatprep.subr.mxu0 0.0
        %2006 = vmatpush1.xpose.msra.mxu0 %v1925
        %2007 = vmatprep.subr.mxu0 0.0
        %2008 = vmatpush1.xpose.msra.mxu0 %v1928
        %2009 = vmatprep.subr.mxu0 0.0
        %2010 = vmatpush1.xpose.msra.mxu0 %v1931
        %2011 = vmatprep.subr.mxu0 0.0
        %2012 = vmatpush1.xpose.msra.mxu0 %v1934
        %2013 = vmatprep.subr.mxu0 0.0
        %2014 = vmatpush1.xpose.msra.mxu0 %v1937
        %2015 = vmatprep.subr.mxu0 0.0
        %2016 = vmatpush1.xpose.msra.mxu0 %v1940
        %2017 = vmatprep.subr.mxu0 0.0
        %2018 = vmatpush1.xpose.msra.mxu0 %v1943
        %2019 = vmatprep.subr.mxu0 0.0
        %2020 = vmatpush1.xpose.msra.mxu0 %v1946
        %2021 = vmatprep.subr.mxu0 0.0
        %2022 = vmatpush1.xpose.msra.mxu0 %v1949
        %2023 = vmatprep.subr.mxu0 0.0
        %2024 = vmatpush1.xpose.msra.mxu0 %v1952
        %2025 = vmatprep.subr.mxu0 0.0
        %2026 = vmatpush1.xpose.msra.mxu0 %v1955
        %2027 = vmatprep.subr.mxu0 0.0
        %2028 = vmatpush1.xpose.msra.mxu0 %v1958
        %2029 = vmatprep.subr.mxu0 0.0
        %2030 = vmatpush1.xpose.msra.mxu0 %v1961
        %2031 = vmatprep.subr.mxu0 0.0
        %2032 = vmatpush1.xpose.msra.mxu0 %v1964
        %2033 = vmatprep.subr.mxu0 0.0
        %2034 = vmatpush1.xpose.msra.mxu0 %v1967
        %2035 = vmatprep.subr.mxu0 0.0
        %2036 = vmatpush1.xpose.msra.mxu0 %v1970
        %2037 = vmatprep.subr.mxu0 0.0
        %2038 = vmatpush1.xpose.msra.mxu0 %v1973
        %2039 = vmatprep.mubr.f32.mxu0 0.0
        %2040 = vmatmul.mubr.f32.gmra.mrb[0].mxu0 %v1877
        %v2041 = vpop.f32.mrb[0].mxu0
        %v2042 = vadd.f32 0.0, %v2041
        %v2043 = vpop.f32.mrb[0].mxu0
        %v2044 = vadd.f32 0.0, %v2043
        %2045 = vdwg.mxu0
        %v2046 = vadd.f32 %v1840, %v2042
        %v2047 = vadd.f32 %v1841, %v2044
        %v2048 = vadd.f32 %v2046, %v2047
        %2049 = vadd.xlane.f32.xlu0 %v2048
        %v2050 = vpop.xlane.xlu0 %2049
        %v2051 = vrcp.pop 256.0
        %v2052 = vmul.f32 %v2050, %v2051
        %v2053 = vsub.f32 %v2046, %v2052
        %v2054 = vsub.f32 %v2047, %v2052
        %v2055 = vmul.f32 %v2053, %v2053
        %v2056 = vmul.f32 %v2054, %v2054
        %v2057 = vadd.f32 %v2055, %v2056
        %2058 = vadd.xlane.f32.xlu0 %v2057
        %v2059 = vpop.xlane.xlu0 %2058
        %v2060 = vmul.f32 %v2059, %v2051
        %v2061 = vadd.f32 %v2060, 1e-05
        %v2062 = vrsqrt.pop %v2061
        %v2063 = vld [vmem:[%s2] sm:$0xff]
        %v2064 = vmul.f32 %v2062, %v2063
        %2066 = vset.pattern.permute.xlu0 0
        %2067 = vperm.xlu0 %2066, %v2064
        %v2068 = vpop.permute.xlu0 %2067
        %v2070 = vmul.f32 %v2053, %v2068
        %v2071 = vmul.f32 %v2054, %v2068
        %v2072 = vld [vmem:[%s3] sm:$0xff]
        %2074 = vset.pattern.permute.xlu0 0
        %2075 = vperm.xlu0 %2074, %v2072
        %v2076 = vpop.permute.xlu0 %2075
        %v2078 = vadd.f32 %v2070, %v2076
        %v2079 = vadd.f32 %v2071, %v2076
        %v2080 = vmax.f32 %v2078, 0.0
        %v2081 = vmax.f32 %v2079, 0.0
        %2082 = vst [vmem:[%s190] sm:$0xff] %v2080
        %2083 = vst [vmem:[%s190 + $0x8] sm:$0xff] %v2081
        %s2084 = sand.u32 %s115, 1
        %s2085 = scalar_lea.sflag [#allocation3], %s2084
        %s2086 = sand.u32 %s115, 1
        %s2087 = smul.addr %s2086, 16
        %s2088 = scalar_lea.vmem [#allocation2], %s2087
        // Predicated region
        $region37: #{tpu_custom_call.1} parent=35 // pred_check
          %p2089 = pneg %p125
        $region38: #{tpu_custom_call.1} parent=35 // pred_check_branch
          %2091 = sbr.rel (%p2089) target = $region40
        $region39: #{tpu_custom_call.1} parent=35 // pred_region
          %s2093 = ssub.s32 256, 256
          %2094 = vsyncadd %s2085, %s2093
          %s2095 = smul.addr %s18, 2
          %s2096 = smul.addr %s2095, 128
          %s2097 = scalar_lea.hbm %s4, %s2096
          %s2099 = sshll.u32 %s2088, 4
          %s2100 = int_to_ptr.vmem [resolvable:$true] %s2099
          %2102 = dma.vmem_to_hbm [thread:$0]  %s2100, 256, %s2097, %s2085
        $region40: #{tpu_custom_call.1} parent=35 // pred_fallthru
          _
      $region36: #{tpu_custom_call.1} parent=5 // pred_fallthru
        _
      %p2103 = scmp.le.s32.totalorder 2, %s13
      // Predicated region
      $region41: #{tpu_custom_call.1} parent=5 // pred_check
        %p2104 = pneg %p2103
      $region42: #{tpu_custom_call.1} parent=5 // pred_check_branch
        %2106 = sbr.rel (%p2104) target = $region44
      $region43: #{tpu_custom_call.1} parent=5 // pred_region
        %s2107 = ssub.s32 %s13, 2
        // Predicated region
        $region45: #{tpu_custom_call.1} parent=43 // pred_check
          %p2108 = pneg %p131
        $region46: #{tpu_custom_call.1} parent=43 // pred_check_branch
          %2110 = sbr.rel (%p2108) target = $region48
        $region47: #{tpu_custom_call.1} parent=43 // pred_region
          %s2111 = sand.u32 %s116, 1
          %s2112 = scalar_lea.sflag [#allocation3], %s2111
          %s2113 = sand.u32 %s116, 1
          %s2114 = smul.addr %s2113, 16
          %s2115 = scalar_lea.vmem [#allocation2], %s2114
          %2116 = dma.done %s2112, 256
        $region48: #{tpu_custom_call.1} parent=43 // pred_fallthru
          _
      $region44: #{tpu_custom_call.1} parent=5 // pred_fallthru
        _
    $region6: #{tpu_custom_call.1} parent=1 // loop_footer
      %s17 = sadd.s32 1, %s13
    $region7: #{tpu_custom_call.1} parent=1 // loop_footer_branch
      %12 = sbr.rel target = $region3
    $region8: #{tpu_custom_call.1} parent=1 // loop_exit
      _
    %2117 = vsyncpa [#allocation3], 1
    %s2118 = scalar_lea.sflag [#allocation3], 1
    %2119 = vsyncpa %s2118, 1

</llo_original>
